<compile_context>
chip_gen: v7x
topology: tpu7x:2x2x1
jax: 0.10.0
libtpu: 0.0.40
codegen_flags: <defaults>
</compile_context>

<pallas_src>
import functools
import math

import jax
import jax.numpy as jnp
from jax import lax
from jax.experimental import pallas as pl
from jax.experimental.pallas import tpu as pltpu


_ON_TPU = jax.default_backend() == "tpu"


def _act_dtype():
    """bf16 elementwise/tanh math only on gens with a bf16 VPU/EUP (v6e, v7x)."""
    if not _ON_TPU:
        return jnp.float32
    try:
        kind = jax.devices()[0].device_kind.lower()
    except Exception:
        return jnp.float32
    if ("v6" in kind) or ("v7" in kind) or ("7x" in kind):
        return jnp.bfloat16
    return jnp.float32


def _recip(x):
    """EUP reciprocal on TPU (free bundle slot); exact divide elsewhere."""
    if _ON_TPU:
        return pl.reciprocal(x, approx=True)
    return 1.0 / x


def _decoder_step_kernel(
    # streamed / resident inputs
    gumbel_ref, dec_in_ref, bin_ref, hidden_ref, enc_ref,
    # GRU parameters (x-side hoisted over all cities at t == 0)
    w_x_ref, b_x_ref, w_h_ref, b_h_ref,
    # attention parameters ([0] = glimpse, [1] = pointer)
    wq_ref, bq_g_ref, wr_ref, br_ref, v_ref,
    # outputs
    probs_ref, idx_ref, hid_out_ref,
    # scratch (persists across the step grid axis)
    rp_g, rp_p, gx_all, gx_cur, h_scr, mask_scr,
    *, seq_len, num_glimpse, use_tanh, tanh_C, hidden_size, act_dtype,
):
    f32 = jnp.float32
    NEG = jnp.float32(-1e30)            # stands in for -inf in masking
    H = hidden_size
    S = seq_len
    bb = hidden_ref.shape[0]            # batch rows handled by this program
    t = pl.program_id(1)                # decode step (innermost grid axis)

    # ---------------- per-batch-block init (first decode step) ----------------
    @pl.when(t == 0)
    def _init():
        # Fused, hoisted encoder projections (glimpse | pointer) in one matmul.
        rp_both = (jnp.dot(enc_ref[...], wr_ref[...],
                           preferred_element_type=f32) + br_ref[...])
        rp_both = rp_both.reshape(bb, S, 2 * H)
        rp_g[...] = rp_both[:, :, :H].astype(act_dtype)
        rp_p[...] = rp_both[:, :, H:].astype(act_dtype)
        # Hoisted input-side GRU projection for every city (+ x-side bias).
        gx_all[...] = (jnp.dot(bin_ref[...], w_x_ref[...],
                               preferred_element_type=f32)
                       + b_x_ref[...]).reshape(bb, S, 3 * H)
        # x-side gates for step 0 come from the decoder start input.
        gx_cur[...] = (jnp.dot(dec_in_ref[...], w_x_ref[...],
                               preferred_element_type=f32) + b_x_ref[...])
        h_scr[...] = hidden_ref[...]
        mask_scr[...] = jnp.zeros_like(mask_scr)
        idx_ref[...] = jnp.zeros_like(idx_ref)

    # ---------------- GRU step (x-side gates precomputed) ----------------
    h = h_scr[...]                                           # [bb, H] f32
    gx = gx_cur[...]                                         # [bb, 3H] f32
    gh = jnp.dot(h.astype(w_h_ref.dtype), w_h_ref[...],
                 preferred_element_type=f32) + b_h_ref[...]  # [bb, 3H]
    r = jax.nn.sigmoid(gx[:, :H] + gh[:, :H])
    z = jax.nn.sigmoid(gx[:, H:2 * H] + gh[:, H:2 * H])
    n = jnp.tanh(gx[:, 2 * H:] + r * gh[:, 2 * H:])
    h = (1.0 - z) * n + z * h
    query = h

    mask = mask_scr[...]                                     # [bb, S] additive
    wq_g = wq_ref[0]
    wq_p = wq_ref[1]
    v_g = v_ref[0][None].astype(act_dtype)                   # [1, 1, H]
    v_p = v_ref[1][None].astype(act_dtype)

    # ---------------- glimpse attention (use_tanh=False) ----------------
    for _ in range(num_glimpse):
        qp = jnp.dot(query.astype(wq_g.dtype), wq_g,
                     preferred_element_type=f32) + bq_g_ref[...]
        tg = jnp.tanh(qp[:, None, :].astype(act_dtype) + rp_g[...])
        g_logits = jnp.sum((tg * v_g).astype(f32), axis=-1) + mask
        g_logits = g_logits - jnp.max(g_logits, axis=-1, keepdims=True)
        e = jnp.exp(g_logits)
        p = e * _recip(jnp.sum(e, axis=-1, keepdims=True))
        # query <- sum_s p[b,s] * (enc @ W_ref + b_ref)[b,s,:]
        query = jnp.sum(rp_g[...].astype(f32) * p[:, :, None], axis=1)

    # ---------------- pointer attention (query bias folded into rp_p) --------
    qp = jnp.dot(query.astype(wq_p.dtype), wq_p, preferred_element_type=f32)
    tp = jnp.tanh(qp[:, None, :].astype(act_dtype) + rp_p[...])
    logits = jnp.sum((tp * v_p).astype(f32), axis=-1)
    if use_tanh:
        logits = jnp.float32(tanh_C) * jnp.tanh(logits)
    logits = logits + mask

    lmax = jnp.max(logits, axis=-1, keepdims=True)
    e = jnp.exp(logits - lmax)
    # exact divide for the emitted policy probabilities (used for log-probs)
    probs = e / jnp.sum(e, axis=-1, keepdims=True)           # [bb, S]
    probs_ref[...] = probs[None]

    # ---------------- multinomial sampling via Gumbel-max --------------------
    iota_f = lax.broadcasted_iota(jnp.int32, (bb, S), 1).astype(f32)
    scores = logits + gumbel_ref[0].astype(f32)
    smax = jnp.max(scores, axis=-1, keepdims=True)
    idx_f = jnp.min(jnp.where(scores >= smax, iota_f, jnp.float32(S)),
                    axis=-1, keepdims=True)                  # [bb, 1]
    sel = (iota_f == idx_f).astype(f32)                      # one-hot [bb, S]

    # carries for the next step
    mask_scr[...] = jnp.minimum(mask, NEG * sel)
    gx_cur[...] = jnp.sum(gx_all[...] * sel[:, :, None], axis=1)
    h_scr[...] = h

    # lane-dense index output: fill column t of the resident (bb, S) block
    iota_i = lax.broadcasted_iota(jnp.int32, (bb, S), 1)
    idx_ref[...] = jnp.where(iota_i == t, idx_f.astype(jnp.int32), idx_ref[...])

    @pl.when(t == seq_len - 1)
    def _final():
        hid_out_ref[...] = h


def _vmem_estimate_bytes(bb, S, E, H, act_bytes, mxu_bytes):
    f32b = 4
    resident = (
        bb * S * H * mxu_bytes          # encoder block (flattened, resident)
        + bb * S * E * mxu_bytes        # batch_input block (resident)
        + bb * E * mxu_bytes            # decoder start input
        + bb * H * f32b                 # initial hidden
        + 2 * bb * S * H * act_bytes    # rp_g / rp_p scratch
        + bb * S * 3 * H * f32b         # gx_all scratch
        + bb * (3 * H + H + S) * f32b   # gx_cur / h / mask carries
        + bb * S * 4 + bb * H * f32b    # idx + hidden output blocks (resident)
    )
    streamed = 2 * (bb * S * 2 + bb * S * f32b)  # gumbel in + probs out, 2x buffered
    weights = ((E + H) * 3 * H + 2 * H * H + H * 2 * H) * mxu_bytes \
              + (6 * H + H + 2 * H + 2 * H) * f32b
    return resident + streamed + weights


def _choose_batch_block(B, S, E, H, act_bytes, mxu_bytes,
                        budget_bytes=36 * 1024 * 1024):
    """Largest batch block (multiple of 8, <=256) that fits the VMEM budget."""
    if B % 8 != 0:
        return B                         # toy sizes: one block over the batch
    bb = min(B, 256) - (min(B, 256) % 8)  # fill the MXU M dimension
    while bb > 8 and (B % bb != 0 or
                      _vmem_estimate_bytes(bb, S, E, H, act_bytes, mxu_bytes)
                      > budget_bytes):
        bb -= 8
    bb = max(bb, 8)
    # v7x has two TensorCores: prefer >=2 batch blocks so the ("parallel",)
    # axis actually spans both when the batch allows it.
    if B // bb < 2 and bb % 16 == 0 and B % (bb // 2) == 0:
        bb //= 2
    return bb


def _make_decoder_call(B, S, E, H, num_glimpse, use_tanh, tanh_C,
                       bb, mxu_dtype, act_dtype):
    kernel = functools.partial(
        _decoder_step_kernel, seq_len=S, num_glimpse=num_glimpse,
        use_tanh=use_tanh, tanh_C=float(tanh_C), hidden_size=H,
        act_dtype=act_dtype)

    act_bytes = jnp.dtype(act_dtype).itemsize
    mxu_bytes = jnp.dtype(mxu_dtype).itemsize
    est = _vmem_estimate_bytes(bb, S, E, H, act_bytes, mxu_bytes)
    # deliberate scoped-VMEM limit: 1.5x estimate + slack, clamped to
    # [16 MiB (above v5e default), 56 MiB (below v7x physical 64 MiB)]
    vmem_limit = int(min(56 * 2**20, max(16 * 2**20, int(est * 1.5) + (2 << 20))))

    return pl.pallas_call(
        kernel,
        out_shape=(
            jax.ShapeDtypeStruct((S, B, S), jnp.float32),   # per-step probs
            jax.ShapeDtypeStruct((B, S), jnp.int32),        # idx[b, t]
            jax.ShapeDtypeStruct((B, H), jnp.float32),      # final hidden
        ),
        grid_spec=pltpu.PrefetchScalarGridSpec(
            num_scalar_prefetch=0,
            grid=(B // bb, S),                              # (batch blocks, decode steps)
            in_specs=[
                pl.BlockSpec((1, bb, S), lambda i, t: (t, i, 0)),   # gumbel (bf16, per step)
                pl.BlockSpec((bb, E), lambda i, t: (i, 0)),         # decoder start input
                pl.BlockSpec((bb * S, E), lambda i, t: (i, 0)),     # batch_input (flat)
                pl.BlockSpec((bb, H), lambda i, t: (i, 0)),         # initial hidden
                pl.BlockSpec((bb * S, H), lambda i, t: (i, 0)),     # encoder outputs (flat)
                pl.BlockSpec((E, 3 * H), lambda i, t: (0, 0)),      # GRU W_x
                pl.BlockSpec((1, 3 * H), lambda i, t: (0, 0)),      # GRU b_x
                pl.BlockSpec((H, 3 * H), lambda i, t: (0, 0)),      # GRU W_h
                pl.BlockSpec((1, 3 * H), lambda i, t: (0, 0)),      # GRU b_h
                pl.BlockSpec((2, H, H), lambda i, t: (0, 0, 0)),    # W_query (stacked)
                pl.BlockSpec((1, H), lambda i, t: (0, 0)),          # glimpse query bias
                pl.BlockSpec((H, 2 * H), lambda i, t: (0, 0)),      # W_ref (fused g|p)
                pl.BlockSpec((1, 2 * H), lambda i, t: (0, 0)),      # ref bias (fused)
                pl.BlockSpec((2, 1, H), lambda i, t: (0, 0, 0)),    # V (stacked)
            ],
            out_specs=[
                pl.BlockSpec((1, bb, S), lambda i, t: (t, i, 0)),   # probs: per-step block
                pl.BlockSpec((bb, S), lambda i, t: (i, 0)),         # idx: lane-dense resident
                pl.BlockSpec((bb, H), lambda i, t: (i, 0)),         # hidden: resident
            ],
            scratch_shapes=[
                pltpu.VMEM((bb, S, H), act_dtype),        # rp_g (glimpse ref proj)
                pltpu.VMEM((bb, S, H), act_dtype),        # rp_p (pointer ref proj)
                pltpu.VMEM((bb, S, 3 * H), jnp.float32),  # gx_all (x-side GRU gates)
                pltpu.VMEM((bb, 3 * H), jnp.float32),     # gx_cur carry
                pltpu.VMEM((bb, H), jnp.float32),         # h carry
                pltpu.VMEM((bb, S), jnp.float32),         # additive mask carry
            ]),
        compiler_params=pltpu.CompilerParams(
            dimension_semantics=("parallel", "arbitrary"),
            vmem_limit_bytes=vmem_limit),
    )


def init_params(key, E, H):
    """Deterministic parameter init mirroring the PyTorch module's shapes."""
    ks = jax.random.split(key, 7)
    bh = 1.0 / math.sqrt(H)
    be = 1.0 / math.sqrt(E)

    def u(k, shape, bound):
        return jax.random.uniform(k, shape, jnp.float32, -bound, bound)

    def attn_params(k):
        kk = jax.random.split(k, 5)
        return dict(
            wq=u(kk[0], (H, H), bh), bq=u(kk[1], (H,), bh),
            wr=u(kk[2], (H, H), bh), br=u(kk[3], (H,), bh),
            v=u(kk[4], (H,), bh),
        )

    return dict(
        w_ih=u(ks[0], (3 * H, E), bh),    # GRU weight_ih_l0 (rows r,z,n)
        w_hh=u(ks[1], (3 * H, H), bh),    # GRU weight_hh_l0
        b_ih=u(ks[2], (3 * H,), bh),
        b_hh=u(ks[3], (3 * H,), bh),
        decoder_start_input=u(ks[4], (E,), be),
        glimpse=attn_params(ks[5]),
        pointer=attn_params(ks[6]),
    )


def stochastic_decoder_forward(params, decoder_input, batch_input, hidden,
                               encoder_outputs, rng_key, *, num_glimpse,
                               use_tanh, tanh_exploration):
    B, S, E = batch_input.shape
    H = encoder_outputs.shape[-1]
    f32 = jnp.float32
    mxu_dtype = jnp.bfloat16 if _ON_TPU else f32   # MXU is bf16-native on all gens
    act_dtype = _act_dtype()                       # bf16 tanh path only on v6e/v7x

    # --- GRU params: x-side [E,3H] and h-side [H,3H], gate order r|z|n ---
    w_x = params["w_ih"].astype(f32).T
    w_h = params["w_hh"].astype(f32).T
    b_x = params["b_ih"].astype(f32).reshape(1, 3 * H)
    b_h = params["b_hh"].astype(f32).reshape(1, 3 * H)

    # --- attention params ([0] = glimpse, [1] = pointer) ---
    g, p = params["glimpse"], params["pointer"]
    wq = jnp.stack([g["wq"].T, p["wq"].T]).astype(mxu_dtype)            # [2, H, H]
    bq_g = g["bq"].reshape(1, H).astype(f32)
    # fused encoder projection (one [H, 2H] matmul); the pointer's query bias
    # folds into its loop-invariant ref bias, the glimpse's cannot.
    wr_both = jnp.concatenate([g["wr"].T, p["wr"].T], axis=1).astype(mxu_dtype)
    br_both = jnp.concatenate([g["br"], p["br"] + p["bq"]]).reshape(1, 2 * H).astype(f32)
    v = jnp.stack([g["v"], p["v"]]).reshape(2, 1, H).astype(f32)

    # --- sampling noise: Gumbel-max on masked logits == torch.multinomial.
    # bf16 halves the largest HBM stream into the kernel.
    # TODO(synk): generate this in-kernel via pltpu.prng_seed/prng_random_bits.
    gumbel = jax.random.gumbel(rng_key, (S, B, S), f32).astype(jnp.bfloat16)

    bb = _choose_batch_block(B, S, E, H,
                             jnp.dtype(act_dtype).itemsize,
                             jnp.dtype(mxu_dtype).itemsize)
    call = _make_decoder_call(B, S, E, H, num_glimpse, use_tanh,
                              tanh_exploration, bb, mxu_dtype, act_dtype)
    probs, idx_bs, h_out = call(
        gumbel,
        decoder_input.astype(mxu_dtype),
        batch_input.reshape(B * S, E).astype(mxu_dtype),
        hidden.reshape(B, H).astype(f32),
        encoder_outputs.reshape(B * S, H).astype(mxu_dtype),
        w_x.astype(mxu_dtype), b_x, w_h.astype(mxu_dtype), b_h,
        wq, bq_g, wr_both, br_both, v,
    )
    # prob_list ~ [S][B, S], action_idx_list ~ [S][B], hidden ~ [1, B, H]
    return probs, idx_bs.T, h_out.reshape(1, B, H)


if __name__ == "__main__":
    B, S, E, H = 2, 8, 32, 32
    NUM_GLIMPSE, USE_TANH, TANH_C = 1, True, 10.0

    root = jax.random.PRNGKey(0)
    k_par, k_bi, k_enc, k_hid, k_samp = jax.random.split(root, 5)

    params = init_params(k_par, E, H)
    batch_input = jax.random.normal(k_bi, (B, S, E), jnp.float32)
    encoder_outputs = jax.random.normal(k_enc, (B, S, H), jnp.float32)
    hidden = jax.random.normal(k_hid, (1, B, H), jnp.float32)
    decoder_input = jnp.broadcast_to(params["decoder_start_input"], (B, E))

    probs, idxs, h_out = stochastic_decoder_forward(
        params, decoder_input, batch_input, hidden, encoder_outputs, k_samp,
        num_glimpse=NUM_GLIMPSE, use_tanh=USE_TANH, tanh_exploration=TANH_C)
    jax.block_until_ready((probs, idxs, h_out))

    assert probs.shape == (S, B, S)
    assert idxs.shape == (S, B)
    assert h_out.shape == (1, B, H)
    # each per-step row of probs is a valid distribution
    assert bool(jnp.all(jnp.abs(jnp.sum(probs, axis=-1) - 1.0) < 1e-2))
    # sampled actions form a permutation of the cities (masking works)
    assert bool(jnp.all(jnp.sort(idxs, axis=0) ==
                        jnp.arange(S, dtype=idxs.dtype)[:, None]))
    print("KERNEL_OK")
</pallas_src>

<mosaic_0001>
module attributes {stable_mosaic.version = 11 : i64} {
  func.func @_decoder_step_kernel(%arg0: i32, %arg1: i32, %arg2: memref<1x2x8xbf16, #tpu.memory_space<vmem>>, %arg3: memref<2x32xf32, #tpu.memory_space<vmem>>, %arg4: memref<16x32xf32, #tpu.memory_space<vmem>>, %arg5: memref<2x32xf32, #tpu.memory_space<vmem>>, %arg6: memref<16x32xf32, #tpu.memory_space<vmem>>, %arg7: memref<32x96xf32, #tpu.memory_space<vmem>>, %arg8: memref<1x96xf32, #tpu.memory_space<vmem>>, %arg9: memref<32x96xf32, #tpu.memory_space<vmem>>, %arg10: memref<1x96xf32, #tpu.memory_space<vmem>>, %arg11: memref<2x32x32xf32, #tpu.memory_space<vmem>>, %arg12: memref<1x32xf32, #tpu.memory_space<vmem>>, %arg13: memref<32x64xf32, #tpu.memory_space<vmem>>, %arg14: memref<1x64xf32, #tpu.memory_space<vmem>>, %arg15: memref<2x1x32xf32, #tpu.memory_space<vmem>>, %arg16: memref<1x2x8xf32, #tpu.memory_space<vmem>>, %arg17: memref<2x8xi32, #tpu.memory_space<vmem>>, %arg18: memref<2x32xf32, #tpu.memory_space<vmem>>, %arg19: memref<2x8x32xf32, #tpu.memory_space<vmem>>, %arg20: memref<2x8x32xf32, #tpu.memory_space<vmem>>, %arg21: memref<2x8x96xf32, #tpu.memory_space<vmem>>, %arg22: memref<2x96xf32, #tpu.memory_space<vmem>>, %arg23: memref<2x32xf32, #tpu.memory_space<vmem>>, %arg24: memref<2x8xf32, #tpu.memory_space<vmem>>) attributes {dimension_semantics = [#tpu.dimension_semantics<parallel>, #tpu.dimension_semantics<arbitrary>], iteration_bounds = array<i64: 1, 8>, scalar_prefetch = 0 : i64, scratch_operands = 6 : i64, tpu.core_type = #tpu.core_type<tc>, window_params = [{transform_indices = @transform_0, window_bounds = array<i64: 1, 2, 8>}, {transform_indices = @transform_1, window_bounds = array<i64: 2, 32>}, {transform_indices = @transform_2, window_bounds = array<i64: 16, 32>}, {transform_indices = @transform_3, window_bounds = array<i64: 2, 32>}, {transform_indices = @transform_4, window_bounds = array<i64: 16, 32>}, {pipeline_mode = #tpu.pipeline_mode<synchronous>, transform_indices = @transform_5, window_bounds = array<i64: 32, 96>}, {pipeline_mode = #tpu.pipeline_mode<synchronous>, transform_indices = @transform_6, window_bounds = array<i64: 1, 96>}, {pipeline_mode = #tpu.pipeline_mode<synchronous>, transform_indices = @transform_7, window_bounds = array<i64: 32, 96>}, {pipeline_mode = #tpu.pipeline_mode<synchronous>, transform_indices = @transform_8, window_bounds = array<i64: 1, 96>}, {pipeline_mode = #tpu.pipeline_mode<synchronous>, transform_indices = @transform_9, window_bounds = array<i64: 2, 32, 32>}, {pipeline_mode = #tpu.pipeline_mode<synchronous>, transform_indices = @transform_10, window_bounds = array<i64: 1, 32>}, {pipeline_mode = #tpu.pipeline_mode<synchronous>, transform_indices = @transform_11, window_bounds = array<i64: 32, 64>}, {pipeline_mode = #tpu.pipeline_mode<synchronous>, transform_indices = @transform_12, window_bounds = array<i64: 1, 64>}, {pipeline_mode = #tpu.pipeline_mode<synchronous>, transform_indices = @transform_13, window_bounds = array<i64: 2, 1, 32>}, {transform_indices = @transform_14, window_bounds = array<i64: 1, 2, 8>}, {transform_indices = @transform_15, window_bounds = array<i64: 2, 8>}, {transform_indices = @transform_16, window_bounds = array<i64: 2, 32>}]} {
    %c0_i32 = arith.constant 0 : i32
    %0 = arith.cmpi eq, %arg1, %c0_i32 : i32
    %1 = arith.extui %0 : i1 to i32
    %c0_i32_0 = arith.constant 0 : i32
    %2 = arith.cmpi ne, %1, %c0_i32_0 : i32
    scf.if %2 {
      %c0_71 = arith.constant 0 : index
      %c0_72 = arith.constant 0 : index
      %141 = vector.load %arg6[%c0_71, %c0_72] : memref<16x32xf32, #tpu.memory_space<vmem>>, vector<16x32xf32>
      %c0_73 = arith.constant 0 : index
      %c0_74 = arith.constant 0 : index
      %142 = vector.load %arg13[%c0_73, %c0_74] : memref<32x64xf32, #tpu.memory_space<vmem>>, vector<32x64xf32>
      %cst_75 = arith.constant dense<0.000000e+00> : vector<16x64xf32>
      %143 = tpu.matmul %141, %142, %cst_75 {dimension_numbers = #tpu.dot_dimension_numbers<[1], [0], [0], [1], [0, 0, 1, 1], [], []>} : vector<16x32xf32>, vector<32x64xf32>, vector<16x64xf32> -> vector<16x64xf32>
      %c0_76 = arith.constant 0 : index
      %c0_77 = arith.constant 0 : index
      %144 = vector.load %arg14[%c0_76, %c0_77] : memref<1x64xf32, #tpu.memory_space<vmem>>, vector<1x64xf32>
      %145 = vector.broadcast %144 : vector<1x64xf32> to vector<16x64xf32>
      %146 = arith.addf %143, %145 : vector<16x64xf32>
      %147 = vector.shape_cast %146 : vector<16x64xf32> to vector<2x8x64xf32>
      %148 = vector.extract_strided_slice %147 {offsets = [0, 0, 0], sizes = [2, 8, 32], strides = [1, 1, 1]} : vector<2x8x64xf32> to vector<2x8x32xf32>
      %c0_78 = arith.constant 0 : index
      %c0_79 = arith.constant 0 : index
      %c0_80 = arith.constant 0 : index
      %149 = vector.load %arg19[%c0_78, %c0_79, %c0_80] : memref<2x8x32xf32, #tpu.memory_space<vmem>>, vector<2x8x32xf32>
      tpu.vector_store %arg19[%c0_78, %c0_79, %c0_80], %148 {strides = array<i32>} : memref<2x8x32xf32, #tpu.memory_space<vmem>>, vector<2x8x32xf32>,
      %150 = vector.extract_strided_slice %147 {offsets = [0, 0, 32], sizes = [2, 8, 32], strides = [1, 1, 1]} : vector<2x8x64xf32> to vector<2x8x32xf32>
      %c0_81 = arith.constant 0 : index
      %c0_82 = arith.constant 0 : index
      %c0_83 = arith.constant 0 : index
      %151 = vector.load %arg20[%c0_81, %c0_82, %c0_83] : memref<2x8x32xf32, #tpu.memory_space<vmem>>, vector<2x8x32xf32>
      tpu.vector_store %arg20[%c0_81, %c0_82, %c0_83], %150 {strides = array<i32>} : memref<2x8x32xf32, #tpu.memory_space<vmem>>, vector<2x8x32xf32>,
      %c0_84 = arith.constant 0 : index
      %c0_85 = arith.constant 0 : index
      %152 = vector.load %arg4[%c0_84, %c0_85] : memref<16x32xf32, #tpu.memory_space<vmem>>, vector<16x32xf32>
      %c0_86 = arith.constant 0 : index
      %c0_87 = arith.constant 0 : index
      %153 = vector.load %arg7[%c0_86, %c0_87] : memref<32x96xf32, #tpu.memory_space<vmem>>, vector<32x96xf32>
      %cst_88 = arith.constant dense<0.000000e+00> : vector<16x96xf32>
      %154 = tpu.matmul %152, %153, %cst_88 {dimension_numbers = #tpu.dot_dimension_numbers<[1], [0], [0], [1], [0, 0, 1, 1], [], []>} : vector<16x32xf32>, vector<32x96xf32>, vector<16x96xf32> -> vector<16x96xf32>
      %c0_89 = arith.constant 0 : index
      %c0_90 = arith.constant 0 : index
      %155 = vector.load %arg8[%c0_89, %c0_90] : memref<1x96xf32, #tpu.memory_space<vmem>>, vector<1x96xf32>
      %156 = vector.broadcast %155 : vector<1x96xf32> to vector<16x96xf32>
      %157 = arith.addf %154, %156 : vector<16x96xf32>
      %158 = vector.shape_cast %157 : vector<16x96xf32> to vector<2x8x96xf32>
      %c0_91 = arith.constant 0 : index
      %c0_92 = arith.constant 0 : index
      %c0_93 = arith.constant 0 : index
      %159 = vector.load %arg21[%c0_91, %c0_92, %c0_93] : memref<2x8x96xf32, #tpu.memory_space<vmem>>, vector<2x8x96xf32>
      tpu.vector_store %arg21[%c0_91, %c0_92, %c0_93], %158 {strides = array<i32>} : memref<2x8x96xf32, #tpu.memory_space<vmem>>, vector<2x8x96xf32>,
      %c0_94 = arith.constant 0 : index
      %c0_95 = arith.constant 0 : index
      %160 = vector.load %arg3[%c0_94, %c0_95] : memref<2x32xf32, #tpu.memory_space<vmem>>, vector<2x32xf32>
      %c0_96 = arith.constant 0 : index
      %c0_97 = arith.constant 0 : index
      %161 = vector.load %arg7[%c0_96, %c0_97] : memref<32x96xf32, #tpu.memory_space<vmem>>, vector<32x96xf32>
      %cst_98 = arith.constant dense<0.000000e+00> : vector<2x96xf32>
      %162 = tpu.matmul %160, %161, %cst_98 {dimension_numbers = #tpu.dot_dimension_numbers<[1], [0], [0], [1], [0, 0, 1, 1], [], []>} : vector<2x32xf32>, vector<32x96xf32>, vector<2x96xf32> -> vector<2x96xf32>
      %c0_99 = arith.constant 0 : index
      %c0_100 = arith.constant 0 : index
      %163 = vector.load %arg8[%c0_99, %c0_100] : memref<1x96xf32, #tpu.memory_space<vmem>>, vector<1x96xf32>
      %164 = vector.broadcast %163 : vector<1x96xf32> to vector<2x96xf32>
      %165 = arith.addf %162, %164 : vector<2x96xf32>
      %c0_101 = arith.constant 0 : index
      %c0_102 = arith.constant 0 : index
      %166 = vector.load %arg22[%c0_101, %c0_102] : memref<2x96xf32, #tpu.memory_space<vmem>>, vector<2x96xf32>
      tpu.vector_store %arg22[%c0_101, %c0_102], %165 {strides = array<i32>} : memref<2x96xf32, #tpu.memory_space<vmem>>, vector<2x96xf32>,
      %c0_103 = arith.constant 0 : index
      %c0_104 = arith.constant 0 : index
      %167 = vector.load %arg5[%c0_103, %c0_104] : memref<2x32xf32, #tpu.memory_space<vmem>>, vector<2x32xf32>
      %c0_105 = arith.constant 0 : index
      %c0_106 = arith.constant 0 : index
      %168 = vector.load %arg23[%c0_105, %c0_106] : memref<2x32xf32, #tpu.memory_space<vmem>>, vector<2x32xf32>
      tpu.vector_store %arg23[%c0_105, %c0_106], %167 {strides = array<i32>} : memref<2x32xf32, #tpu.memory_space<vmem>>, vector<2x32xf32>,
      %cst_107 = arith.constant 0.000000e+00 : f32
      %169 = vector.broadcast %cst_107 : f32 to vector<2x8xf32>
      %c0_108 = arith.constant 0 : index
      %c0_109 = arith.constant 0 : index
      %170 = vector.load %arg24[%c0_108, %c0_109] : memref<2x8xf32, #tpu.memory_space<vmem>>, vector<2x8xf32>
      tpu.vector_store %arg24[%c0_108, %c0_109], %169 {strides = array<i32>} : memref<2x8xf32, #tpu.memory_space<vmem>>, vector<2x8xf32>,
      %c0_i32_110 = arith.constant 0 : i32
      %171 = vector.broadcast %c0_i32_110 : i32 to vector<2x8xi32>
      %c0_111 = arith.constant 0 : index
      %c0_112 = arith.constant 0 : index
      %172 = vector.load %arg17[%c0_111, %c0_112] : memref<2x8xi32, #tpu.memory_space<vmem>>, vector<2x8xi32>
      tpu.vector_store %arg17[%c0_111, %c0_112], %171 {strides = array<i32>} : memref<2x8xi32, #tpu.memory_space<vmem>>, vector<2x8xi32>,
    } else {
    }
    %c0 = arith.constant 0 : index
    %c0_1 = arith.constant 0 : index
    %3 = vector.load %arg23[%c0, %c0_1] : memref<2x32xf32, #tpu.memory_space<vmem>>, vector<2x32xf32>
    %c0_2 = arith.constant 0 : index
    %c0_3 = arith.constant 0 : index
    %4 = vector.load %arg22[%c0_2, %c0_3] : memref<2x96xf32, #tpu.memory_space<vmem>>, vector<2x96xf32>
    %c0_4 = arith.constant 0 : index
    %c0_5 = arith.constant 0 : index
    %5 = vector.load %arg9[%c0_4, %c0_5] : memref<32x96xf32, #tpu.memory_space<vmem>>, vector<32x96xf32>
    %cst = arith.constant dense<0.000000e+00> : vector<2x96xf32>
    %6 = tpu.matmul %3, %5, %cst {dimension_numbers = #tpu.dot_dimension_numbers<[1], [0], [0], [1], [0, 0, 1, 1], [], []>} : vector<2x32xf32>, vector<32x96xf32>, vector<2x96xf32> -> vector<2x96xf32>
    %c0_6 = arith.constant 0 : index
    %c0_7 = arith.constant 0 : index
    %7 = vector.load %arg10[%c0_6, %c0_7] : memref<1x96xf32, #tpu.memory_space<vmem>>, vector<1x96xf32>
    %8 = vector.broadcast %7 : vector<1x96xf32> to vector<2x96xf32>
    %9 = arith.addf %6, %8 : vector<2x96xf32>
    %10 = vector.extract_strided_slice %4 {offsets = [0, 0], sizes = [2, 32], strides = [1, 1]} : vector<2x96xf32> to vector<2x32xf32>
    %11 = vector.extract_strided_slice %9 {offsets = [0, 0], sizes = [2, 32], strides = [1, 1]} : vector<2x96xf32> to vector<2x32xf32>
    %12 = arith.addf %10, %11 : vector<2x32xf32>
    %13 = arith.negf %12 : vector<2x32xf32>
    %14 = math.exp %13 : vector<2x32xf32>
    %cst_8 = arith.constant 1.000000e+00 : f32
    %15 = vector.broadcast %cst_8 : f32 to vector<2x32xf32>
    %16 = arith.addf %15, %14 : vector<2x32xf32>
    %17 = arith.divf %15, %16 : vector<2x32xf32>
    %18 = vector.extract_strided_slice %4 {offsets = [0, 32], sizes = [2, 32], strides = [1, 1]} : vector<2x96xf32> to vector<2x32xf32>
    %19 = vector.extract_strided_slice %9 {offsets = [0, 32], sizes = [2, 32], strides = [1, 1]} : vector<2x96xf32> to vector<2x32xf32>
    %20 = arith.addf %18, %19 : vector<2x32xf32>
    %21 = arith.negf %20 : vector<2x32xf32>
    %22 = math.exp %21 : vector<2x32xf32>
    %cst_9 = arith.constant 1.000000e+00 : f32
    %23 = vector.broadcast %cst_9 : f32 to vector<2x32xf32>
    %24 = arith.addf %23, %22 : vector<2x32xf32>
    %25 = arith.divf %23, %24 : vector<2x32xf32>
    %26 = vector.extract_strided_slice %4 {offsets = [0, 64], sizes = [2, 32], strides = [1, 1]} : vector<2x96xf32> to vector<2x32xf32>
    %27 = vector.extract_strided_slice %9 {offsets = [0, 64], sizes = [2, 32], strides = [1, 1]} : vector<2x96xf32> to vector<2x32xf32>
    %28 = arith.mulf %17, %27 : vector<2x32xf32>
    %29 = arith.addf %26, %28 : vector<2x32xf32>
    %30 = math.tanh %29 : vector<2x32xf32>
    %cst_10 = arith.constant 1.000000e+00 : f32
    %31 = vector.broadcast %cst_10 : f32 to vector<2x32xf32>
    %32 = arith.subf %31, %25 : vector<2x32xf32>
    %33 = arith.mulf %32, %30 : vector<2x32xf32>
    %34 = arith.mulf %25, %3 : vector<2x32xf32>
    %35 = arith.addf %33, %34 : vector<2x32xf32>
    %c0_11 = arith.constant 0 : index
    %c0_12 = arith.constant 0 : index
    %36 = vector.load %arg24[%c0_11, %c0_12] : memref<2x8xf32, #tpu.memory_space<vmem>>, vector<2x8xf32>
    %c0_13 = arith.constant 0 : index
    %c0_14 = arith.constant 0 : index
    %c0_15 = arith.constant 0 : index
    %37 = vector.load %arg11[%c0_13, %c0_14, %c0_15] : memref<2x32x32xf32, #tpu.memory_space<vmem>>, vector<1x32x32xf32>
    %38 = vector.shape_cast %37 : vector<1x32x32xf32> to vector<32x32xf32>
    %c1 = arith.constant 1 : index
    %c0_16 = arith.constant 0 : index
    %c0_17 = arith.constant 0 : index
    %39 = vector.load %arg11[%c1, %c0_16, %c0_17] : memref<2x32x32xf32, #tpu.memory_space<vmem>>, vector<1x32x32xf32>
    %40 = vector.shape_cast %39 : vector<1x32x32xf32> to vector<32x32xf32>
    %c0_18 = arith.constant 0 : index
    %c0_19 = arith.constant 0 : index
    %c0_20 = arith.constant 0 : index
    %41 = vector.load %arg15[%c0_18, %c0_19, %c0_20] : memref<2x1x32xf32, #tpu.memory_space<vmem>>, vector<1x1x32xf32>
    %42 = vector.shape_cast %41 : vector<1x1x32xf32> to vector<1x32xf32>
    %43 = vector.shape_cast %42 : vector<1x32xf32> to vector<1x1x32xf32>
    %c1_21 = arith.constant 1 : index
    %c0_22 = arith.constant 0 : index
    %c0_23 = arith.constant 0 : index
    %44 = vector.load %arg15[%c1_21, %c0_22, %c0_23] : memref<2x1x32xf32, #tpu.memory_space<vmem>>, vector<1x1x32xf32>
    %45 = vector.shape_cast %44 : vector<1x1x32xf32> to vector<1x32xf32>
    %46 = vector.shape_cast %45 : vector<1x32xf32> to vector<1x1x32xf32>
    %cst_24 = arith.constant dense<0.000000e+00> : vector<2x32xf32>
    %47 = tpu.matmul %35, %38, %cst_24 {dimension_numbers = #tpu.dot_dimension_numbers<[1], [0], [0], [1], [0, 0, 1, 1], [], []>} : vector<2x32xf32>, vector<32x32xf32>, vector<2x32xf32> -> vector<2x32xf32>
    %c0_25 = arith.constant 0 : index
    %c0_26 = arith.constant 0 : index
    %48 = vector.load %arg12[%c0_25, %c0_26] : memref<1x32xf32, #tpu.memory_space<vmem>>, vector<1x32xf32>
    %49 = vector.broadcast %48 : vector<1x32xf32> to vector<2x32xf32>
    %50 = arith.addf %47, %49 : vector<2x32xf32>
    %51 = vector.shape_cast %50 : vector<2x32xf32> to vector<2x1x32xf32>
    %c0_27 = arith.constant 0 : index
    %c0_28 = arith.constant 0 : index
    %c0_29 = arith.constant 0 : index
    %52 = vector.load %arg19[%c0_27, %c0_28, %c0_29] : memref<2x8x32xf32, #tpu.memory_space<vmem>>, vector<2x8x32xf32>
    %53 = vector.broadcast %51 : vector<2x1x32xf32> to vector<2x8x32xf32>
    %54 = arith.addf %53, %52 : vector<2x8x32xf32>
    %55 = math.tanh %54 : vector<2x8x32xf32>
    %56 = vector.broadcast %43 : vector<1x1x32xf32> to vector<2x8x32xf32>
    %57 = arith.mulf %55, %56 : vector<2x8x32xf32>
    %cst_30 = arith.constant dense<0.000000e+00> : vector<2x8xf32>
    %58 = vector.multi_reduction <add>, %57, %cst_30 [2] : vector<2x8x32xf32> to vector<2x8xf32>
    %59 = arith.addf %58, %36 : vector<2x8xf32>
    %cst_31 = arith.constant dense<0xFF800000> : vector<2xf32>
    %60 = vector.multi_reduction <maximumf>, %59, %cst_31 [1] : vector<2x8xf32> to vector<2xf32>
    %61 = vector.shape_cast %60 : vector<2xf32> to vector<2x1xf32>
    %62 = vector.broadcast %61 : vector<2x1xf32> to vector<2x8xf32>
    %63 = arith.subf %59, %62 : vector<2x8xf32>
    %64 = math.exp %63 : vector<2x8xf32>
    %cst_32 = arith.constant dense<0.000000e+00> : vector<2xf32>
    %65 = vector.multi_reduction <add>, %64, %cst_32 [1] : vector<2x8xf32> to vector<2xf32>
    %66 = vector.shape_cast %65 : vector<2xf32> to vector<2x1xf32>
    %cst_33 = arith.constant 1.000000e+00 : f32
    %67 = vector.broadcast %cst_33 : f32 to vector<2x1xf32>
    %68 = arith.divf %67, %66 : vector<2x1xf32>
    %69 = vector.broadcast %68 : vector<2x1xf32> to vector<2x8xf32>
    %70 = arith.mulf %64, %69 : vector<2x8xf32>
    %c0_34 = arith.constant 0 : index
    %c0_35 = arith.constant 0 : index
    %c0_36 = arith.constant 0 : index
    %71 = vector.load %arg19[%c0_34, %c0_35, %c0_36] : memref<2x8x32xf32, #tpu.memory_space<vmem>>, vector<2x8x32xf32>
    %72 = vector.shape_cast %70 : vector<2x8xf32> to vector<2x8x1xf32>
    %73 = vector.broadcast %72 : vector<2x8x1xf32> to vector<2x8x32xf32>
    %74 = arith.mulf %71, %73 : vector<2x8x32xf32>
    %cst_37 = arith.constant dense<0.000000e+00> : vector<2x32xf32>
    %75 = vector.multi_reduction <add>, %74, %cst_37 [1] : vector<2x8x32xf32> to vector<2x32xf32>
    %cst_38 = arith.constant dense<0.000000e+00> : vector<2x32xf32>
    %76 = tpu.matmul %75, %40, %cst_38 {dimension_numbers = #tpu.dot_dimension_numbers<[1], [0], [0], [1], [0, 0, 1, 1], [], []>} : vector<2x32xf32>, vector<32x32xf32>, vector<2x32xf32> -> vector<2x32xf32>
    %77 = vector.shape_cast %76 : vector<2x32xf32> to vector<2x1x32xf32>
    %c0_39 = arith.constant 0 : index
    %c0_40 = arith.constant 0 : index
    %c0_41 = arith.constant 0 : index
    %78 = vector.load %arg20[%c0_39, %c0_40, %c0_41] : memref<2x8x32xf32, #tpu.memory_space<vmem>>, vector<2x8x32xf32>
    %79 = vector.broadcast %77 : vector<2x1x32xf32> to vector<2x8x32xf32>
    %80 = arith.addf %79, %78 : vector<2x8x32xf32>
    %81 = math.tanh %80 : vector<2x8x32xf32>
    %82 = vector.broadcast %46 : vector<1x1x32xf32> to vector<2x8x32xf32>
    %83 = arith.mulf %81, %82 : vector<2x8x32xf32>
    %cst_42 = arith.constant dense<0.000000e+00> : vector<2x8xf32>
    %84 = vector.multi_reduction <add>, %83, %cst_42 [2] : vector<2x8x32xf32> to vector<2x8xf32>
    %85 = math.tanh %84 : vector<2x8xf32>
    %cst_43 = arith.constant 1.000000e+01 : f32
    %86 = vector.broadcast %cst_43 : f32 to vector<2x8xf32>
    %87 = arith.mulf %86, %85 : vector<2x8xf32>
    %88 = arith.addf %87, %36 : vector<2x8xf32>
    %cst_44 = arith.constant dense<0xFF800000> : vector<2xf32>
    %89 = vector.multi_reduction <maximumf>, %88, %cst_44 [1] : vector<2x8xf32> to vector<2xf32>
    %90 = vector.shape_cast %89 : vector<2xf32> to vector<2x1xf32>
    %91 = vector.broadcast %90 : vector<2x1xf32> to vector<2x8xf32>
    %92 = arith.subf %88, %91 : vector<2x8xf32>
    %93 = math.exp %92 : vector<2x8xf32>
    %cst_45 = arith.constant dense<0.000000e+00> : vector<2xf32>
    %94 = vector.multi_reduction <add>, %93, %cst_45 [1] : vector<2x8xf32> to vector<2xf32>
    %95 = vector.shape_cast %94 : vector<2xf32> to vector<2x1xf32>
    %96 = vector.broadcast %95 : vector<2x1xf32> to vector<2x8xf32>
    %97 = arith.divf %93, %96 : vector<2x8xf32>
    %98 = vector.shape_cast %97 : vector<2x8xf32> to vector<1x2x8xf32>
    %c0_46 = arith.constant 0 : index
    %c0_47 = arith.constant 0 : index
    %c0_48 = arith.constant 0 : index
    %99 = vector.load %arg16[%c0_46, %c0_47, %c0_48] : memref<1x2x8xf32, #tpu.memory_space<vmem>>, vector<1x2x8xf32>
    tpu.vector_store %arg16[%c0_46, %c0_47, %c0_48], %98 {strides = array<i32>} : memref<1x2x8xf32, #tpu.memory_space<vmem>>, vector<1x2x8xf32>,
    %100 = tpu.iota {dimensions = array<i32: 1>} : vector<2x8xi32>
    %101 = arith.sitofp %100 : vector<2x8xi32> to vector<2x8xf32>
    %c0_49 = arith.constant 0 : index
    %c0_50 = arith.constant 0 : index
    %c0_51 = arith.constant 0 : index
    %102 = vector.load %arg2[%c0_49, %c0_50, %c0_51] : memref<1x2x8xbf16, #tpu.memory_space<vmem>>, vector<1x2x8xbf16>
    %103 = vector.shape_cast %102 : vector<1x2x8xbf16> to vector<2x8xbf16>
    %104 = arith.extf %103 : vector<2x8xbf16> to vector<2x8xf32>
    %105 = arith.addf %88, %104 : vector<2x8xf32>
    %cst_52 = arith.constant dense<0xFF800000> : vector<2xf32>
    %106 = vector.multi_reduction <maximumf>, %105, %cst_52 [1] : vector<2x8xf32> to vector<2xf32>
    %107 = vector.shape_cast %106 : vector<2xf32> to vector<2x1xf32>
    %108 = vector.broadcast %107 : vector<2x1xf32> to vector<2x8xf32>
    %109 = arith.cmpf oge, %105, %108 : vector<2x8xf32>
    %cst_53 = arith.constant 8.000000e+00 : f32
    %110 = vector.broadcast %cst_53 : f32 to vector<2x8xf32>
    %111 = arith.select %109, %101, %110 : vector<2x8xi1>, vector<2x8xf32>
    %cst_54 = arith.constant dense<0x7F800000> : vector<2xf32>
    %112 = vector.multi_reduction <minimumf>, %111, %cst_54 [1] : vector<2x8xf32> to vector<2xf32>
    %113 = vector.shape_cast %112 : vector<2xf32> to vector<2x1xf32>
    %114 = vector.broadcast %113 : vector<2x1xf32> to vector<2x8xf32>
    %115 = arith.cmpf oeq, %101, %114 : vector<2x8xf32>
    %116 = arith.extui %115 : vector<2x8xi1> to vector<2x8xi32>
    %117 = arith.sitofp %116 : vector<2x8xi32> to vector<2x8xf32>
    %cst_55 = arith.constant -1.000000e+30 : f32
    %118 = vector.broadcast %cst_55 : f32 to vector<2x8xf32>
    %119 = arith.mulf %118, %117 : vector<2x8xf32>
    %120 = arith.minimumf %36, %119 : vector<2x8xf32>
    %c0_56 = arith.constant 0 : index
    %c0_57 = arith.constant 0 : index
    %121 = vector.load %arg24[%c0_56, %c0_57] : memref<2x8xf32, #tpu.memory_space<vmem>>, vector<2x8xf32>
    tpu.vector_store %arg24[%c0_56, %c0_57], %120 {strides = array<i32>} : memref<2x8xf32, #tpu.memory_space<vmem>>, vector<2x8xf32>,
    %c0_58 = arith.constant 0 : index
    %c0_59 = arith.constant 0 : index
    %c0_60 = arith.constant 0 : index
    %122 = vector.load %arg21[%c0_58, %c0_59, %c0_60] : memref<2x8x96xf32, #tpu.memory_space<vmem>>, vector<2x8x96xf32>
    %123 = vector.shape_cast %117 : vector<2x8xf32> to vector<2x8x1xf32>
    %124 = vector.broadcast %123 : vector<2x8x1xf32> to vector<2x8x96xf32>
    %125 = arith.mulf %122, %124 : vector<2x8x96xf32>
    %cst_61 = arith.constant dense<0.000000e+00> : vector<2x96xf32>
    %126 = vector.multi_reduction <add>, %125, %cst_61 [1] : vector<2x8x96xf32> to vector<2x96xf32>
    %c0_62 = arith.constant 0 : index
    %c0_63 = arith.constant 0 : index
    %127 = vector.load %arg22[%c0_62, %c0_63] : memref<2x96xf32, #tpu.memory_space<vmem>>, vector<2x96xf32>
    tpu.vector_store %arg22[%c0_62, %c0_63], %126 {strides = array<i32>} : memref<2x96xf32, #tpu.memory_space<vmem>>, vector<2x96xf32>,
    %c0_64 = arith.constant 0 : index
    %c0_65 = arith.constant 0 : index
    %128 = vector.load %arg23[%c0_64, %c0_65] : memref<2x32xf32, #tpu.memory_space<vmem>>, vector<2x32xf32>
    tpu.vector_store %arg23[%c0_64, %c0_65], %35 {strides = array<i32>} : memref<2x32xf32, #tpu.memory_space<vmem>>, vector<2x32xf32>,
    %129 = tpu.iota {dimensions = array<i32: 1>} : vector<2x8xi32>
    %130 = vector.broadcast %arg1 : i32 to vector<2x8xi32>
    %131 = arith.cmpi eq, %129, %130 : vector<2x8xi32>
    %132 = arith.fptosi %113 : vector<2x1xf32> to vector<2x1xi32>
    %c0_66 = arith.constant 0 : index
    %c0_67 = arith.constant 0 : index
    %133 = vector.load %arg17[%c0_66, %c0_67] : memref<2x8xi32, #tpu.memory_space<vmem>>, vector<2x8xi32>
    %134 = vector.shape_cast %132 : vector<2x1xi32> to vector<2x1xi32>
    %135 = vector.broadcast %134 : vector<2x1xi32> to vector<2x8xi32>
    %136 = arith.select %131, %135, %133 : vector<2x8xi1>, vector<2x8xi32>
    %c0_68 = arith.constant 0 : index
    %c0_69 = arith.constant 0 : index
    %137 = vector.load %arg17[%c0_68, %c0_69] : memref<2x8xi32, #tpu.memory_space<vmem>>, vector<2x8xi32>
    tpu.vector_store %arg17[%c0_68, %c0_69], %136 {strides = array<i32>} : memref<2x8xi32, #tpu.memory_space<vmem>>, vector<2x8xi32>,
    %c7_i32 = arith.constant 7 : i32
    %138 = arith.cmpi eq, %arg1, %c7_i32 : i32
    %139 = arith.extui %138 : i1 to i32
    %c0_i32_70 = arith.constant 0 : i32
    %140 = arith.cmpi ne, %139, %c0_i32_70 : i32
    scf.if %140 {
      %c0_71 = arith.constant 0 : index
      %c0_72 = arith.constant 0 : index
      %141 = vector.load %arg18[%c0_71, %c0_72] : memref<2x32xf32, #tpu.memory_space<vmem>>, vector<2x32xf32>
      tpu.vector_store %arg18[%c0_71, %c0_72], %35 {strides = array<i32>} : memref<2x32xf32, #tpu.memory_space<vmem>>, vector<2x32xf32>,
    } else {
    }
    return
  }
  func.func @transform_0(%arg0: i32, %arg1: i32) -> (i32, i32, i32) {
    %c0_i32 = arith.constant 0 : i32
    %c0_i32_0 = arith.constant 0 : i32
    return %arg1, %arg0, %c0_i32 : i32, i32, i32
  }
  func.func @transform_1(%arg0: i32, %arg1: i32) -> (i32, i32) {
    %c0_i32 = arith.constant 0 : i32
    %c0_i32_0 = arith.constant 0 : i32
    return %arg0, %c0_i32 : i32, i32
  }
  func.func @transform_2(%arg0: i32, %arg1: i32) -> (i32, i32) {
    %c0_i32 = arith.constant 0 : i32
    %c0_i32_0 = arith.constant 0 : i32
    return %arg0, %c0_i32 : i32, i32
  }
  func.func @transform_3(%arg0: i32, %arg1: i32) -> (i32, i32) {
    %c0_i32 = arith.constant 0 : i32
    %c0_i32_0 = arith.constant 0 : i32
    return %arg0, %c0_i32 : i32, i32
  }
  func.func @transform_4(%arg0: i32, %arg1: i32) -> (i32, i32) {
    %c0_i32 = arith.constant 0 : i32
    %c0_i32_0 = arith.constant 0 : i32
    return %arg0, %c0_i32 : i32, i32
  }
  func.func @transform_5(%arg0: i32, %arg1: i32) -> (i32, i32) {
    %c0_i32 = arith.constant 0 : i32
    %c0_i32_0 = arith.constant 0 : i32
    %c0_i32_1 = arith.constant 0 : i32
    return %c0_i32, %c0_i32_0 : i32, i32
  }
  func.func @transform_6(%arg0: i32, %arg1: i32) -> (i32, i32) {
    %c0_i32 = arith.constant 0 : i32
    %c0_i32_0 = arith.constant 0 : i32
    %c0_i32_1 = arith.constant 0 : i32
    return %c0_i32, %c0_i32_0 : i32, i32
  }
  func.func @transform_7(%arg0: i32, %arg1: i32) -> (i32, i32) {
    %c0_i32 = arith.constant 0 : i32
    %c0_i32_0 = arith.constant 0 : i32
    %c0_i32_1 = arith.constant 0 : i32
    return %c0_i32, %c0_i32_0 : i32, i32
  }
  func.func @transform_8(%arg0: i32, %arg1: i32) -> (i32, i32) {
    %c0_i32 = arith.constant 0 : i32
    %c0_i32_0 = arith.constant 0 : i32
    %c0_i32_1 = arith.constant 0 : i32
    return %c0_i32, %c0_i32_0 : i32, i32
  }
  func.func @transform_9(%arg0: i32, %arg1: i32) -> (i32, i32, i32) {
    %c0_i32 = arith.constant 0 : i32
    %c0_i32_0 = arith.constant 0 : i32
    %c0_i32_1 = arith.constant 0 : i32
    %c0_i32_2 = arith.constant 0 : i32
    return %c0_i32, %c0_i32_0, %c0_i32_1 : i32, i32, i32
  }
  func.func @transform_10(%arg0: i32, %arg1: i32) -> (i32, i32) {
    %c0_i32 = arith.constant 0 : i32
    %c0_i32_0 = arith.constant 0 : i32
    %c0_i32_1 = arith.constant 0 : i32
    return %c0_i32, %c0_i32_0 : i32, i32
  }
  func.func @transform_11(%arg0: i32, %arg1: i32) -> (i32, i32) {
    %c0_i32 = arith.constant 0 : i32
    %c0_i32_0 = arith.constant 0 : i32
    %c0_i32_1 = arith.constant 0 : i32
    return %c0_i32, %c0_i32_0 : i32, i32
  }
  func.func @transform_12(%arg0: i32, %arg1: i32) -> (i32, i32) {
    %c0_i32 = arith.constant 0 : i32
    %c0_i32_0 = arith.constant 0 : i32
    %c0_i32_1 = arith.constant 0 : i32
    return %c0_i32, %c0_i32_0 : i32, i32
  }
  func.func @transform_13(%arg0: i32, %arg1: i32) -> (i32, i32, i32) {
    %c0_i32 = arith.constant 0 : i32
    %c0_i32_0 = arith.constant 0 : i32
    %c0_i32_1 = arith.constant 0 : i32
    %c0_i32_2 = arith.constant 0 : i32
    return %c0_i32, %c0_i32_0, %c0_i32_1 : i32, i32, i32
  }
  func.func @transform_14(%arg0: i32, %arg1: i32) -> (i32, i32, i32) {
    %c0_i32 = arith.constant 0 : i32
    %c0_i32_0 = arith.constant 0 : i32
    return %arg1, %arg0, %c0_i32 : i32, i32, i32
  }
  func.func @transform_15(%arg0: i32, %arg1: i32) -> (i32, i32) {
    %c0_i32 = arith.constant 0 : i32
    %c0_i32_0 = arith.constant 0 : i32
    return %arg0, %c0_i32 : i32, i32
  }
  func.func @transform_16(%arg0: i32, %arg1: i32) -> (i32, i32) {
    %c0_i32 = arith.constant 0 : i32
    %c0_i32_0 = arith.constant 0 : i32
    return %arg0, %c0_i32 : i32, i32
  }
}

</mosaic_0001>

<llo_original>
// kernel: tpu_custom_call.1
$region0: #{tpu_custom_call.1}
  #allocation0 [shape = 'u32[]', space=smem, size = 0x4, offset = 0x4, fixed_abs, tag = 'smem constant byte address 0x4 - core index']
  #allocation1 [shape = 'u32[144,128]{1,0:T(1,128)}', space=vmem, size = 0x12000, scoped, tag = 'internal scratch']
  #allocation2 [shape = 'f32[2,8,32]{2,1,0:T(8,128)}', space=vmem, size = 0x2000, scoped, tag = 'scratch operand']
  #allocation3 [shape = 'f32[2,8,32]{2,1,0:T(8,128)}', space=vmem, size = 0x2000, scoped, tag = 'scratch operand']
  #allocation4 [shape = 'f32[2,8,96]{2,1,0:T(8,128)}', space=vmem, size = 0x2000, scoped, tag = 'scratch operand']
  #allocation5 [shape = 'f32[2,96]{1,0:T(2,128)}', space=vmem, size = 0x400, scoped, tag = 'scratch operand']
  #allocation6 [shape = 'f32[2,32]{1,0:T(2,128)}', space=vmem, size = 0x400, scoped, tag = 'scratch operand']
  #allocation7 [shape = 'f32[2,8]{1,0:T(2,128)}', space=vmem, size = 0x400, scoped, tag = 'scratch operand']
  %s0 = inlined_call_operand.hbm [shape: bf16[8,2,8], index: 0, kind: input, shape index: {}]
  %s1 = inlined_call_operand.vmem [shape: f32[2,32], index: 1, kind: input, shape index: {}]
  %s2 = inlined_call_operand.hbm [shape: f32[16,32], index: 2, kind: input, shape index: {}]
  %s3 = inlined_call_operand.vmem [shape: f32[2,32], index: 3, kind: input, shape index: {}]
  %s4 = inlined_call_operand.hbm [shape: f32[16,32], index: 4, kind: input, shape index: {}]
  %s5 = inlined_call_operand.hbm [shape: f32[32,96], index: 5, kind: input, shape index: {}]
  %s6 = inlined_call_operand.vmem [shape: f32[1,96], index: 6, kind: input, shape index: {}]
  %s7 = inlined_call_operand.hbm [shape: f32[32,96], index: 7, kind: input, shape index: {}]
  %s8 = inlined_call_operand.vmem [shape: f32[1,96], index: 8, kind: input, shape index: {}]
  %s9 = inlined_call_operand.hbm [shape: f32[2,32,32], index: 9, kind: input, shape index: {}]
  %s10 = inlined_call_operand.vmem [shape: f32[1,32], index: 10, kind: input, shape index: {}]
  %s11 = inlined_call_operand.vmem [shape: f32[32,64], index: 11, kind: input, shape index: {}]
  %s12 = inlined_call_operand.vmem [shape: f32[1,64], index: 12, kind: input, shape index: {}]
  %s13 = inlined_call_operand.vmem [shape: f32[2,1,32], index: 13, kind: input, shape index: {}]
  %s14 = inlined_call_operand.hbm [shape: f32[8,2,8], index: 14, kind: output, shape index: {0}]
  %s15 = inlined_call_operand.hbm [shape: s32[2,8], index: 15, kind: output, shape index: {1}]
  %s16 = inlined_call_operand.hbm [shape: f32[2,32], index: 16, kind: output, shape index: {2}]
  %17 = xla_tuple %s14, %s15, %s16
  %s18 = sld [smem:[#allocation0]]
  $region137: #{tpu_custom_call.1} parent=0
    _
  %s20 = ssub.s32 1, %s18
  %s21 = scalar_select 0, %s20, %s18
  $region1: #{tpu_custom_call.1} parent=0
    #allocation8 [shape = 'u8[1024]{0}', space=vmem, size = 0x400, scoped, tag = 'input window, operand 0']
    #allocation9 [shape = 's32[2]{0}', space=sflag, size = 0x8, scoped, tag = 'scoped memory for tpu_custom_call.1']
    #allocation10 [shape = 's32[2]{0}', space=sflag, size = 0x8, scoped, tag = 'scoped memory for tpu_custom_call.1']
    #allocation11 [shape = 'u8[8192]{0}', space=vmem, size = 0x2000, scoped, tag = 'input window, operand 2, single buffered']
    #allocation12 [shape = 's32[1]{0}', space=sflag, size = 0x4, scoped, tag = 'scoped memory for tpu_custom_call.1']
    #allocation13 [shape = 'u8[8192]{0}', space=vmem, size = 0x2000, scoped, tag = 'input window, operand 4, single buffered']
    #allocation14 [shape = 'u8[16384]{0}', space=vmem, size = 0x4000, scoped, tag = 'input window, operand 5, single buffered']
    #allocation15 [shape = 's32[1]{0}', space=sflag, size = 0x4, scoped, tag = 'scoped memory for tpu_custom_call.1']
    #allocation16 [shape = 'u8[16384]{0}', space=vmem, size = 0x4000, scoped, tag = 'input window, operand 7, single buffered']
    #allocation17 [shape = 'u8[32768]{0}', space=vmem, size = 0x8000, scoped, tag = 'input window, operand 9, single buffered']
    #allocation18 [shape = 's32[1]{0}', space=sflag, size = 0x4, scoped, tag = 'scoped memory for tpu_custom_call.1']
    #allocation19 [shape = 'u8[2048]{0}', space=vmem, size = 0x800, scoped, tag = 'output window, operand 0']
    #allocation20 [shape = 'u8[1024]{0}', space=vmem, size = 0x400, scoped, tag = 'output window, operand 1, single buffered']
    #allocation21 [shape = 's32[1]{0}', space=sflag, size = 0x4, scoped, tag = 'scoped memory for tpu_custom_call.1']
    #allocation22 [shape = 'u8[1024]{0}', space=vmem, size = 0x400, scoped, tag = 'output window, operand 2, single buffered']
    %22 = vsyncpa [#allocation9], 0
    %s23 = scalar_lea.sflag [#allocation9], 1
    %24 = vsyncpa %s23, 0
    %25 = vsyncpa [#allocation12], 0
    %26 = vsyncpa [#allocation15], 0
    %27 = vsyncpa [#allocation18], 0
    %28 = vsyncpa [#allocation10], 0
    %s29 = scalar_lea.sflag [#allocation10], 1
    %30 = vsyncpa %s29, 0
    %31 = vsyncpa [#allocation21], 0
    loop: start=0, step=1, limit=10
    $region2: #{tpu_custom_call.1} parent=1 // loop_pre_header
      _
    $region3: #{tpu_custom_call.1} parent=1 // loop_header
      %s33 = sphi 0, %s37
      %p34 = scmp.ge.s32.totalorder %s33, 10
      %s40 = sphi 0, %s52
      %s41 = sphi 0, %s48
      %s42 = sphi 0, %s40
      %s43 = sphi 0, %s41
      %s44 = sphi 0, %s42
      %s45 = sphi 0, %s43
      %s57 = sphi 0, %s59
      %s60 = sphi 0, %s57
      %s61 = sphi 0, %s60
      %s77 = sphi 0, %s61
      %s83 = sphi 0, %s85
      %s86 = sphi 0, %s83
      %s87 = sphi 0, %s86
      %s103 = sphi 0, %s87
      %s109 = sphi 0, %s111
      %s112 = sphi 0, %s109
      %s113 = sphi 0, %s112
      %s129 = sphi 0, %s113
      %s135 = sphi 0, %s137
      %s138 = sphi 0, %s135
      %s139 = sphi 0, %s138
      %s155 = sphi 0, %s139
      %s161 = sphi 0, %s163
      %s164 = sphi 0, %s161
      %s165 = sphi 0, %s164
      %s181 = sphi 0, %s165
      %s185 = sphi 0, %s185
      %s187 = sphi 0, %s185
      %s188 = sphi 0, %s187
      %s202 = sphi 0, %s188
      %s206 = sphi 0, %s206
      %s208 = sphi 0, %s206
      %s209 = sphi 0, %s208
      %s223 = sphi 0, %s209
      %s227 = sphi 0, %s227
      %s229 = sphi 0, %s227
      %s230 = sphi 0, %s229
      %s244 = sphi 0, %s230
      %s248 = sphi 0, %s248
      %s250 = sphi 0, %s248
      %s251 = sphi 0, %s250
      %s265 = sphi 0, %s251
      %s269 = sphi 0, %s269
      %s271 = sphi 0, %s269
      %s272 = sphi 0, %s271
      %s286 = sphi 0, %s272
      %s290 = sphi 0, %s290
      %s292 = sphi 0, %s290
      %s293 = sphi 0, %s292
      %s307 = sphi 0, %s293
      %s311 = sphi 0, %s311
      %s313 = sphi 0, %s311
      %s314 = sphi 0, %s313
      %s328 = sphi 0, %s314
      %s332 = sphi 0, %s332
      %s334 = sphi 0, %s332
      %s335 = sphi 0, %s334
      %s349 = sphi 0, %s335
      %s353 = sphi 0, %s353
      %s355 = sphi 0, %s353
      %s356 = sphi 0, %s355
      %s370 = sphi 0, %s356
      %s378 = sphi 0, %s380
      %s381 = sphi 0, %s378
      %s382 = sphi 0, %s381
      %s398 = sphi 0, %s382
      %s404 = sphi 0, %s406
      %s407 = sphi 0, %s404
      %s408 = sphi 0, %s407
      %s424 = sphi 0, %s408
      %s430 = sphi 0, %s432
      %s433 = sphi 0, %s430
      %s434 = sphi 0, %s433
      %s450 = sphi 0, %s434
    $region4: #{tpu_custom_call.1} parent=1 // loop_header_branch
      %36 = sbr.rel (%p34) target = $region8
    $region5: #{tpu_custom_call.1} parent=1 // loop_body
      %s38 = ssub.s32 %s33, 1
      %s39 = ssub.s32 %s33, 2
      %s46 = sadd.s32 1, %s41
      %p47 = scmp.ge.s32.totalorder %s46, 8
      %s48 = scalar_select %p47, 0, %s46
      %s49 = sadd.s32 1, %s40
      %s50 = scalar_select %p47, %s49, %s40
      %p51 = scmp.ge.s32.totalorder %s50, 1
      %s52 = scalar_select %p51, 0, %s50
      %s53 = ssub.s32 %s41, %s48
      %s54 = ssub.s32 %s40, %s52
      %s55 = sor.u32 %s53, %s54
      %p56 = scmp.eq.s32.totalorder %s55, 0
      %s58 = sadd.s32 %s57, 1
      %s59 = scalar_select %p56, %s57, %s58
      %p62 = pneg %p56
      %p63 = scmp.eq.s32.totalorder %s33, 7
      %p64 = por %p62, %p63
      %p65 = scmp.ne.s32.totalorder %s57, %s60
      %p66 = scmp.eq.s32.totalorder %s33, 0
      %p67 = por %p65, %p66
      %p68 = scmp.ne.s32.totalorder %s57, %s60
      %p69 = scmp.eq.s32.totalorder %s38, 7
      %p70 = por %p68, %p69
      %p71 = scmp.ne.s32.totalorder %s60, %s61
      %p72 = scmp.eq.s32.totalorder %s38, 0
      %p73 = por %p71, %p72
      %p74 = scmp.ne.s32.totalorder %s60, %s61
      %p75 = scmp.eq.s32.totalorder %s39, 7
      %p76 = por %p74, %p75
      %p78 = scmp.ne.s32.totalorder %s61, %s77
      %p79 = scmp.eq.s32.totalorder %s39, 0
      %p80 = por %p78, %p79
      %s81 = ssub.s32 %s40, %s52
      %p82 = scmp.eq.s32.totalorder %s81, 0
      %s84 = sadd.s32 %s83, 1
      %s85 = scalar_select %p82, %s83, %s84
      %p88 = pneg %p82
      %p89 = scmp.eq.s32.totalorder %s33, 7
      %p90 = por %p88, %p89
      %p91 = scmp.ne.s32.totalorder %s83, %s86
      %p92 = scmp.eq.s32.totalorder %s33, 0
      %p93 = por %p91, %p92
      %p94 = scmp.ne.s32.totalorder %s83, %s86
      %p95 = scmp.eq.s32.totalorder %s38, 7
      %p96 = por %p94, %p95
      %p97 = scmp.ne.s32.totalorder %s86, %s87
      %p98 = scmp.eq.s32.totalorder %s38, 0
      %p99 = por %p97, %p98
      %p100 = scmp.ne.s32.totalorder %s86, %s87
      %p101 = scmp.eq.s32.totalorder %s39, 7
      %p102 = por %p100, %p101
      %p104 = scmp.ne.s32.totalorder %s87, %s103
      %p105 = scmp.eq.s32.totalorder %s39, 0
      %p106 = por %p104, %p105
      %s107 = ssub.s32 %s40, %s52
      %p108 = scmp.eq.s32.totalorder %s107, 0
      %s110 = sadd.s32 %s109, 1
      %s111 = scalar_select %p108, %s109, %s110
      %p114 = pneg %p108
      %p115 = scmp.eq.s32.totalorder %s33, 7
      %p116 = por %p114, %p115
      %p117 = scmp.ne.s32.totalorder %s109, %s112
      %p118 = scmp.eq.s32.totalorder %s33, 0
      %p119 = por %p117, %p118
      %p120 = scmp.ne.s32.totalorder %s109, %s112
      %p121 = scmp.eq.s32.totalorder %s38, 7
      %p122 = por %p120, %p121
      %p123 = scmp.ne.s32.totalorder %s112, %s113
      %p124 = scmp.eq.s32.totalorder %s38, 0
      %p125 = por %p123, %p124
      %p126 = scmp.ne.s32.totalorder %s112, %s113
      %p127 = scmp.eq.s32.totalorder %s39, 7
      %p128 = por %p126, %p127
      %p130 = scmp.ne.s32.totalorder %s113, %s129
      %p131 = scmp.eq.s32.totalorder %s39, 0
      %p132 = por %p130, %p131
      %s133 = ssub.s32 %s40, %s52
      %p134 = scmp.eq.s32.totalorder %s133, 0
      %s136 = sadd.s32 %s135, 1
      %s137 = scalar_select %p134, %s135, %s136
      %p140 = pneg %p134
      %p141 = scmp.eq.s32.totalorder %s33, 7
      %p142 = por %p140, %p141
      %p143 = scmp.ne.s32.totalorder %s135, %s138
      %p144 = scmp.eq.s32.totalorder %s33, 0
      %p145 = por %p143, %p144
      %p146 = scmp.ne.s32.totalorder %s135, %s138
      %p147 = scmp.eq.s32.totalorder %s38, 7
      %p148 = por %p146, %p147
      %p149 = scmp.ne.s32.totalorder %s138, %s139
      %p150 = scmp.eq.s32.totalorder %s38, 0
      %p151 = por %p149, %p150
      %p152 = scmp.ne.s32.totalorder %s138, %s139
      %p153 = scmp.eq.s32.totalorder %s39, 7
      %p154 = por %p152, %p153
      %p156 = scmp.ne.s32.totalorder %s139, %s155
      %p157 = scmp.eq.s32.totalorder %s39, 0
      %p158 = por %p156, %p157
      %s159 = ssub.s32 %s40, %s52
      %p160 = scmp.eq.s32.totalorder %s159, 0
      %s162 = sadd.s32 %s161, 1
      %s163 = scalar_select %p160, %s161, %s162
      %p166 = pneg %p160
      %p167 = scmp.eq.s32.totalorder %s33, 7
      %p168 = por %p166, %p167
      %p169 = scmp.ne.s32.totalorder %s161, %s164
      %p170 = scmp.eq.s32.totalorder %s33, 0
      %p171 = por %p169, %p170
      %p172 = scmp.ne.s32.totalorder %s161, %s164
      %p173 = scmp.eq.s32.totalorder %s38, 7
      %p174 = por %p172, %p173
      %p175 = scmp.ne.s32.totalorder %s164, %s165
      %p176 = scmp.eq.s32.totalorder %s38, 0
      %p177 = por %p175, %p176
      %p178 = scmp.ne.s32.totalorder %s164, %s165
      %p179 = scmp.eq.s32.totalorder %s39, 7
      %p180 = por %p178, %p179
      %p182 = scmp.ne.s32.totalorder %s165, %s181
      %p183 = scmp.eq.s32.totalorder %s39, 0
      %p184 = por %p182, %p183
      %s186 = sadd.s32 %s185, 1
      %p189 = scmp.eq.s32.totalorder %s33, 7
      %p190 = scmp.ne.s32.totalorder %s185, %s187
      %p191 = scmp.eq.s32.totalorder %s33, 0
      %p192 = por %p190, %p191
      %p193 = scmp.ne.s32.totalorder %s185, %s187
      %p194 = scmp.eq.s32.totalorder %s38, 7
      %p195 = por %p193, %p194
      %p196 = scmp.ne.s32.totalorder %s187, %s188
      %p197 = scmp.eq.s32.totalorder %s38, 0
      %p198 = por %p196, %p197
      %p199 = scmp.ne.s32.totalorder %s187, %s188
      %p200 = scmp.eq.s32.totalorder %s39, 7
      %p201 = por %p199, %p200
      %p203 = scmp.ne.s32.totalorder %s188, %s202
      %p204 = scmp.eq.s32.totalorder %s39, 0
      %p205 = por %p203, %p204
      %s207 = sadd.s32 %s206, 1
      %p210 = scmp.eq.s32.totalorder %s33, 7
      %p211 = scmp.ne.s32.totalorder %s206, %s208
      %p212 = scmp.eq.s32.totalorder %s33, 0
      %p213 = por %p211, %p212
      %p214 = scmp.ne.s32.totalorder %s206, %s208
      %p215 = scmp.eq.s32.totalorder %s38, 7
      %p216 = por %p214, %p215
      %p217 = scmp.ne.s32.totalorder %s208, %s209
      %p218 = scmp.eq.s32.totalorder %s38, 0
      %p219 = por %p217, %p218
      %p220 = scmp.ne.s32.totalorder %s208, %s209
      %p221 = scmp.eq.s32.totalorder %s39, 7
      %p222 = por %p220, %p221
      %p224 = scmp.ne.s32.totalorder %s209, %s223
      %p225 = scmp.eq.s32.totalorder %s39, 0
      %p226 = por %p224, %p225
      %s228 = sadd.s32 %s227, 1
      %p231 = scmp.eq.s32.totalorder %s33, 7
      %p232 = scmp.ne.s32.totalorder %s227, %s229
      %p233 = scmp.eq.s32.totalorder %s33, 0
      %p234 = por %p232, %p233
      %p235 = scmp.ne.s32.totalorder %s227, %s229
      %p236 = scmp.eq.s32.totalorder %s38, 7
      %p237 = por %p235, %p236
      %p238 = scmp.ne.s32.totalorder %s229, %s230
      %p239 = scmp.eq.s32.totalorder %s38, 0
      %p240 = por %p238, %p239
      %p241 = scmp.ne.s32.totalorder %s229, %s230
      %p242 = scmp.eq.s32.totalorder %s39, 7
      %p243 = por %p241, %p242
      %p245 = scmp.ne.s32.totalorder %s230, %s244
      %p246 = scmp.eq.s32.totalorder %s39, 0
      %p247 = por %p245, %p246
      %s249 = sadd.s32 %s248, 1
      %p252 = scmp.eq.s32.totalorder %s33, 7
      %p253 = scmp.ne.s32.totalorder %s248, %s250
      %p254 = scmp.eq.s32.totalorder %s33, 0
      %p255 = por %p253, %p254
      %p256 = scmp.ne.s32.totalorder %s248, %s250
      %p257 = scmp.eq.s32.totalorder %s38, 7
      %p258 = por %p256, %p257
      %p259 = scmp.ne.s32.totalorder %s250, %s251
      %p260 = scmp.eq.s32.totalorder %s38, 0
      %p261 = por %p259, %p260
      %p262 = scmp.ne.s32.totalorder %s250, %s251
      %p263 = scmp.eq.s32.totalorder %s39, 7
      %p264 = por %p262, %p263
      %p266 = scmp.ne.s32.totalorder %s251, %s265
      %p267 = scmp.eq.s32.totalorder %s39, 0
      %p268 = por %p266, %p267
      %s270 = sadd.s32 %s269, 1
      %p273 = scmp.eq.s32.totalorder %s33, 7
      %p274 = scmp.ne.s32.totalorder %s269, %s271
      %p275 = scmp.eq.s32.totalorder %s33, 0
      %p276 = por %p274, %p275
      %p277 = scmp.ne.s32.totalorder %s269, %s271
      %p278 = scmp.eq.s32.totalorder %s38, 7
      %p279 = por %p277, %p278
      %p280 = scmp.ne.s32.totalorder %s271, %s272
      %p281 = scmp.eq.s32.totalorder %s38, 0
      %p282 = por %p280, %p281
      %p283 = scmp.ne.s32.totalorder %s271, %s272
      %p284 = scmp.eq.s32.totalorder %s39, 7
      %p285 = por %p283, %p284
      %p287 = scmp.ne.s32.totalorder %s272, %s286
      %p288 = scmp.eq.s32.totalorder %s39, 0
      %p289 = por %p287, %p288
      %s291 = sadd.s32 %s290, 1
      %p294 = scmp.eq.s32.totalorder %s33, 7
      %p295 = scmp.ne.s32.totalorder %s290, %s292
      %p296 = scmp.eq.s32.totalorder %s33, 0
      %p297 = por %p295, %p296
      %p298 = scmp.ne.s32.totalorder %s290, %s292
      %p299 = scmp.eq.s32.totalorder %s38, 7
      %p300 = por %p298, %p299
      %p301 = scmp.ne.s32.totalorder %s292, %s293
      %p302 = scmp.eq.s32.totalorder %s38, 0
      %p303 = por %p301, %p302
      %p304 = scmp.ne.s32.totalorder %s292, %s293
      %p305 = scmp.eq.s32.totalorder %s39, 7
      %p306 = por %p304, %p305
      %p308 = scmp.ne.s32.totalorder %s293, %s307
      %p309 = scmp.eq.s32.totalorder %s39, 0
      %p310 = por %p308, %p309
      %s312 = sadd.s32 %s311, 1
      %p315 = scmp.eq.s32.totalorder %s33, 7
      %p316 = scmp.ne.s32.totalorder %s311, %s313
      %p317 = scmp.eq.s32.totalorder %s33, 0
      %p318 = por %p316, %p317
      %p319 = scmp.ne.s32.totalorder %s311, %s313
      %p320 = scmp.eq.s32.totalorder %s38, 7
      %p321 = por %p319, %p320
      %p322 = scmp.ne.s32.totalorder %s313, %s314
      %p323 = scmp.eq.s32.totalorder %s38, 0
      %p324 = por %p322, %p323
      %p325 = scmp.ne.s32.totalorder %s313, %s314
      %p326 = scmp.eq.s32.totalorder %s39, 7
      %p327 = por %p325, %p326
      %p329 = scmp.ne.s32.totalorder %s314, %s328
      %p330 = scmp.eq.s32.totalorder %s39, 0
      %p331 = por %p329, %p330
      %s333 = sadd.s32 %s332, 1
      %p336 = scmp.eq.s32.totalorder %s33, 7
      %p337 = scmp.ne.s32.totalorder %s332, %s334
      %p338 = scmp.eq.s32.totalorder %s33, 0
      %p339 = por %p337, %p338
      %p340 = scmp.ne.s32.totalorder %s332, %s334
      %p341 = scmp.eq.s32.totalorder %s38, 7
      %p342 = por %p340, %p341
      %p343 = scmp.ne.s32.totalorder %s334, %s335
      %p344 = scmp.eq.s32.totalorder %s38, 0
      %p345 = por %p343, %p344
      %p346 = scmp.ne.s32.totalorder %s334, %s335
      %p347 = scmp.eq.s32.totalorder %s39, 7
      %p348 = por %p346, %p347
      %p350 = scmp.ne.s32.totalorder %s335, %s349
      %p351 = scmp.eq.s32.totalorder %s39, 0
      %p352 = por %p350, %p351
      %s354 = sadd.s32 %s353, 1
      %p357 = scmp.eq.s32.totalorder %s33, 7
      %p358 = scmp.ne.s32.totalorder %s353, %s355
      %p359 = scmp.eq.s32.totalorder %s33, 0
      %p360 = por %p358, %p359
      %p361 = scmp.ne.s32.totalorder %s353, %s355
      %p362 = scmp.eq.s32.totalorder %s38, 7
      %p363 = por %p361, %p362
      %p364 = scmp.ne.s32.totalorder %s355, %s356
      %p365 = scmp.eq.s32.totalorder %s38, 0
      %p366 = por %p364, %p365
      %p367 = scmp.ne.s32.totalorder %s355, %s356
      %p368 = scmp.eq.s32.totalorder %s39, 7
      %p369 = por %p367, %p368
      %p371 = scmp.ne.s32.totalorder %s356, %s370
      %p372 = scmp.eq.s32.totalorder %s39, 0
      %p373 = por %p371, %p372
      %s374 = ssub.s32 %s41, %s48
      %s375 = ssub.s32 %s40, %s52
      %s376 = sor.u32 %s374, %s375
      %p377 = scmp.eq.s32.totalorder %s376, 0
      %s379 = sadd.s32 %s378, 1
      %s380 = scalar_select %p377, %s378, %s379
      %p383 = pneg %p377
      %p384 = scmp.eq.s32.totalorder %s33, 7
      %p385 = por %p383, %p384
      %p386 = scmp.ne.s32.totalorder %s378, %s381
      %p387 = scmp.eq.s32.totalorder %s33, 0
      %p388 = por %p386, %p387
      %p389 = scmp.ne.s32.totalorder %s378, %s381
      %p390 = scmp.eq.s32.totalorder %s38, 7
      %p391 = por %p389, %p390
      %p392 = scmp.ne.s32.totalorder %s381, %s382
      %p393 = scmp.eq.s32.totalorder %s38, 0
      %p394 = por %p392, %p393
      %p395 = scmp.ne.s32.totalorder %s381, %s382
      %p396 = scmp.eq.s32.totalorder %s39, 7
      %p397 = por %p395, %p396
      %p399 = scmp.ne.s32.totalorder %s382, %s398
      %p400 = scmp.eq.s32.totalorder %s39, 0
      %p401 = por %p399, %p400
      %s402 = ssub.s32 %s40, %s52
      %p403 = scmp.eq.s32.totalorder %s402, 0
      %s405 = sadd.s32 %s404, 1
      %s406 = scalar_select %p403, %s404, %s405
      %p409 = pneg %p403
      %p410 = scmp.eq.s32.totalorder %s33, 7
      %p411 = por %p409, %p410
      %p412 = scmp.ne.s32.totalorder %s404, %s407
      %p413 = scmp.eq.s32.totalorder %s33, 0
      %p414 = por %p412, %p413
      %p415 = scmp.ne.s32.totalorder %s404, %s407
      %p416 = scmp.eq.s32.totalorder %s38, 7
      %p417 = por %p415, %p416
      %p418 = scmp.ne.s32.totalorder %s407, %s408
      %p419 = scmp.eq.s32.totalorder %s38, 0
      %p420 = por %p418, %p419
      %p421 = scmp.ne.s32.totalorder %s407, %s408
      %p422 = scmp.eq.s32.totalorder %s39, 7
      %p423 = por %p421, %p422
      %p425 = scmp.ne.s32.totalorder %s408, %s424
      %p426 = scmp.eq.s32.totalorder %s39, 0
      %p427 = por %p425, %p426
      %s428 = ssub.s32 %s40, %s52
      %p429 = scmp.eq.s32.totalorder %s428, 0
      %s431 = sadd.s32 %s430, 1
      %s432 = scalar_select %p429, %s430, %s431
      %p435 = pneg %p429
      %p436 = scmp.eq.s32.totalorder %s33, 7
      %p437 = por %p435, %p436
      %p438 = scmp.ne.s32.totalorder %s430, %s433
      %p439 = scmp.eq.s32.totalorder %s33, 0
      %p440 = por %p438, %p439
      %p441 = scmp.ne.s32.totalorder %s430, %s433
      %p442 = scmp.eq.s32.totalorder %s38, 7
      %p443 = por %p441, %p442
      %p444 = scmp.ne.s32.totalorder %s433, %s434
      %p445 = scmp.eq.s32.totalorder %s38, 0
      %p446 = por %p444, %p445
      %p447 = scmp.ne.s32.totalorder %s433, %s434
      %p448 = scmp.eq.s32.totalorder %s39, 7
      %p449 = por %p447, %p448
      %p451 = scmp.ne.s32.totalorder %s434, %s450
      %p452 = scmp.eq.s32.totalorder %s39, 0
      %p453 = por %p451, %p452
      %p454 = scmp.le.s32.totalorder 1, %s33
      %p455 = scmp.lt.s32.totalorder %s33, 9
      %p456 = pnand %p454, %p455
      %p457 = pneg %p456
      // Predicated region
      $region9: #{tpu_custom_call.1} parent=5 // pred_check
        _
      $region10: #{tpu_custom_call.1} parent=5 // pred_check_branch
        %459 = sbr.rel (%p456) target = $region12
      $region11: #{tpu_custom_call.1} parent=5 // pred_region
        %s460 = ssub.s32 %s33, 1
        // Predicated region
        $region13: #{tpu_custom_call.1} parent=11 // pred_check
          %p461 = pneg %p99
        $region14: #{tpu_custom_call.1} parent=11 // pred_check_branch
          %463 = sbr.rel (%p461) target = $region16
        $region15: #{tpu_custom_call.1} parent=11 // pred_region
          %p464 = scmp.lt.s32.totalorder %s42, 0
          %s465 = scalar_select %p464, %s42, 0
          %s466 = smul.addr %s465, 2
          %s467 = scalar_lea.vmem %s1, %s466
        $region16: #{tpu_custom_call.1} parent=11 // pred_fallthru
          _
        // Predicated region
        $region17: #{tpu_custom_call.1} parent=11 // pred_check
          %p468 = pneg %p125
        $region18: #{tpu_custom_call.1} parent=11 // pred_check_branch
          %470 = sbr.rel (%p468) target = $region20
        $region19: #{tpu_custom_call.1} parent=11 // pred_region
          %s471 = smul.u32 2, %s42
          %s473 = ssub.s32 256, 256
          %474 = vsyncadd [#allocation12], %s473
          %s475 = smul.addr %s471, 128
          %s476 = scalar_lea.hbm %s2, %s475
          %s477 = sshll.u32 [#allocation11], 4
          %s478 = int_to_ptr.vmem [resolvable:$true] %s477
          %483 = dma.hbm_to_vmem [thread:$0]  %s476, 256, %s478, [#allocation12], 128, 128, 8
        $region20: #{tpu_custom_call.1} parent=11 // pred_fallthru
          _
        // Predicated region
        $region21: #{tpu_custom_call.1} parent=11 // pred_check
          %p484 = pneg %p151
        $region22: #{tpu_custom_call.1} parent=11 // pred_check_branch
          %486 = sbr.rel (%p484) target = $region24
        $region23: #{tpu_custom_call.1} parent=11 // pred_region
          %p487 = scmp.lt.s32.totalorder %s42, 0
          %s488 = scalar_select %p487, %s42, 0
          %s489 = smul.addr %s488, 2
          %s490 = scalar_lea.vmem %s3, %s489
        $region24: #{tpu_custom_call.1} parent=11 // pred_fallthru
          _
        // Predicated region
        $region25: #{tpu_custom_call.1} parent=11 // pred_check
          %p491 = pneg %p177
        $region26: #{tpu_custom_call.1} parent=11 // pred_check_branch
          %493 = sbr.rel (%p491) target = $region28
        $region27: #{tpu_custom_call.1} parent=11 // pred_region
          %s494 = smul.u32 2, %s42
          %s496 = ssub.s32 256, 256
          %497 = vsyncadd [#allocation12], %s496
          %s498 = smul.addr %s494, 128
          %s499 = scalar_lea.hbm %s4, %s498
          %s500 = sshll.u32 [#allocation13], 4
          %s501 = int_to_ptr.vmem [resolvable:$true] %s500
          %506 = dma.hbm_to_vmem [thread:$0]  %s499, 256, %s501, [#allocation12], 128, 128, 8
        $region28: #{tpu_custom_call.1} parent=11 // pred_fallthru
          _
        // Predicated region
        $region29: #{tpu_custom_call.1} parent=11 // pred_check
          %p507 = pneg %p198
        $region30: #{tpu_custom_call.1} parent=11 // pred_check_branch
          %509 = sbr.rel (%p507) target = $region32
        $region31: #{tpu_custom_call.1} parent=11 // pred_region
          %s511 = ssub.s32 512, 512
          %512 = vsyncadd [#allocation15], %s511
          %s513 = sshll.u32 [#allocation14], 4
          %s514 = int_to_ptr.vmem [resolvable:$true] %s513
          %519 = dma.hbm_to_vmem [thread:$0]  %s5, 512, %s514, [#allocation15], 128, 128, 8
        $region32: #{tpu_custom_call.1} parent=11 // pred_fallthru
          _
        // Predicated region
        $region33: #{tpu_custom_call.1} parent=11 // pred_check
          %p520 = pneg %p219
        $region34: #{tpu_custom_call.1} parent=11 // pred_check_branch
          %522 = sbr.rel (%p520) target = $region36
        $region35: #{tpu_custom_call.1} parent=11 // pred_region
          _
        $region36: #{tpu_custom_call.1} parent=11 // pred_fallthru
          _
        // Predicated region
        $region37: #{tpu_custom_call.1} parent=11 // pred_check
          %p523 = pneg %p240
        $region38: #{tpu_custom_call.1} parent=11 // pred_check_branch
          %525 = sbr.rel (%p523) target = $region40
        $region39: #{tpu_custom_call.1} parent=11 // pred_region
          %s527 = ssub.s32 512, 512
          %528 = vsyncadd [#allocation15], %s527
          %s529 = sshll.u32 [#allocation16], 4
          %s530 = int_to_ptr.vmem [resolvable:$true] %s529
          %535 = dma.hbm_to_vmem [thread:$0]  %s7, 512, %s530, [#allocation15], 128, 128, 8
        $region40: #{tpu_custom_call.1} parent=11 // pred_fallthru
          _
        // Predicated region
        $region41: #{tpu_custom_call.1} parent=11 // pred_check
          %p536 = pneg %p261
        $region42: #{tpu_custom_call.1} parent=11 // pred_check_branch
          %538 = sbr.rel (%p536) target = $region44
        $region43: #{tpu_custom_call.1} parent=11 // pred_region
          _
        $region44: #{tpu_custom_call.1} parent=11 // pred_fallthru
          _
        // Predicated region
        $region45: #{tpu_custom_call.1} parent=11 // pred_check
          %p539 = pneg %p282
        $region46: #{tpu_custom_call.1} parent=11 // pred_check_branch
          %541 = sbr.rel (%p539) target = $region48
        $region47: #{tpu_custom_call.1} parent=11 // pred_region
          %s543 = ssub.s32 1024, 1024
          %544 = vsyncadd [#allocation18], %s543
          %s545 = sshll.u32 [#allocation17], 4
          %s546 = int_to_ptr.vmem [resolvable:$true] %s545
          %551 = dma.hbm_to_vmem [thread:$0]  %s9, 1024, %s546, [#allocation18], 128, 128, 8
        $region48: #{tpu_custom_call.1} parent=11 // pred_fallthru
          _
        // Predicated region
        $region49: #{tpu_custom_call.1} parent=11 // pred_check
          %p552 = pneg %p303
        $region50: #{tpu_custom_call.1} parent=11 // pred_check_branch
          %554 = sbr.rel (%p552) target = $region52
        $region51: #{tpu_custom_call.1} parent=11 // pred_region
          _
        $region52: #{tpu_custom_call.1} parent=11 // pred_fallthru
          _
        // Predicated region
        $region53: #{tpu_custom_call.1} parent=11 // pred_check
          %p555 = pneg %p324
        $region54: #{tpu_custom_call.1} parent=11 // pred_check_branch
          %557 = sbr.rel (%p555) target = $region56
        $region55: #{tpu_custom_call.1} parent=11 // pred_region
          _
        $region56: #{tpu_custom_call.1} parent=11 // pred_fallthru
          _
        // Predicated region
        $region57: #{tpu_custom_call.1} parent=11 // pred_check
          %p558 = pneg %p345
        $region58: #{tpu_custom_call.1} parent=11 // pred_check_branch
          %560 = sbr.rel (%p558) target = $region60
        $region59: #{tpu_custom_call.1} parent=11 // pred_region
          _
        $region60: #{tpu_custom_call.1} parent=11 // pred_fallthru
          _
        // Predicated region
        $region61: #{tpu_custom_call.1} parent=11 // pred_check
          %p561 = pneg %p366
        $region62: #{tpu_custom_call.1} parent=11 // pred_check_branch
          %563 = sbr.rel (%p561) target = $region64
        $region63: #{tpu_custom_call.1} parent=11 // pred_region
          _
        $region64: #{tpu_custom_call.1} parent=11 // pred_fallthru
          _
      $region12: #{tpu_custom_call.1} parent=5 // pred_fallthru
        _
      %p564 = scmp.lt.s32.totalorder %s33, 8
      // Predicated region
      $region65: #{tpu_custom_call.1} parent=5 // pred_check
        %p565 = pneg %p564
      $region66: #{tpu_custom_call.1} parent=5 // pred_check_branch
        %567 = sbr.rel (%p565) target = $region68
      $region67: #{tpu_custom_call.1} parent=5 // pred_region
        // Predicated region
        $region69: #{tpu_custom_call.1} parent=67 // pred_check
          %p568 = pneg %p67
        $region70: #{tpu_custom_call.1} parent=67 // pred_check_branch
          %570 = sbr.rel (%p568) target = $region72
        $region71: #{tpu_custom_call.1} parent=67 // pred_region
          %s571 = sand.u32 %s57, 1
          %s572 = scalar_lea.sflag [#allocation9], %s571
          %s573 = sand.u32 %s57, 1
          %s574 = scalar_lea.vmem [#allocation8], %s573
          %s576 = ssub.s32 16, 16
          %577 = vsyncadd %s572, %s576
          %s578 = sadd.s32 %s40, %s41
          %s579 = smul.addr %s578, 16
          %s580 = scalar_lea.hbm %s0, %s579
          %s582 = sshll.u32 %s574, 4
          %s583 = int_to_ptr.vmem [resolvable:$true] %s582
          %585 = dma.hbm_to_vmem [thread:$0]  %s580, 16, %s583, %s572
        $region72: #{tpu_custom_call.1} parent=67 // pred_fallthru
          _
      $region68: #{tpu_custom_call.1} parent=5 // pred_fallthru
        _
      %p586 = scmp.le.s32.totalorder 1, %s33
      %p587 = scmp.lt.s32.totalorder %s33, 9
      %p588 = pnand %p586, %p587
      %p589 = pneg %p588
      // Predicated region
      $region73: #{tpu_custom_call.1} parent=5 // pred_check
        _
      $region74: #{tpu_custom_call.1} parent=5 // pred_check_branch
        %591 = sbr.rel (%p588) target = $region76
      $region75: #{tpu_custom_call.1} parent=5 // pred_region
        %s592 = ssub.s32 %s33, 1
        %s593 = sand.u32 %s60, 1
        %s594 = scalar_lea.sflag [#allocation9], %s593
        %s595 = sand.u32 %s60, 1
        %s596 = scalar_lea.vmem [#allocation8], %s595
        // Predicated region
        $region77: #{tpu_custom_call.1} parent=75 // pred_check
          %p597 = pneg %p73
        $region78: #{tpu_custom_call.1} parent=75 // pred_check_branch
          %599 = sbr.rel (%p597) target = $region80
        $region79: #{tpu_custom_call.1} parent=75 // pred_region
          %600 = dma.done %s594, 16
        $region80: #{tpu_custom_call.1} parent=75 // pred_fallthru
          _
        // Predicated region
        $region81: #{tpu_custom_call.1} parent=75 // pred_check
          %p601 = pneg %p125
        $region82: #{tpu_custom_call.1} parent=75 // pred_check_branch
          %603 = sbr.rel (%p601) target = $region84
        $region83: #{tpu_custom_call.1} parent=75 // pred_region
          %604 = dma.done [#allocation12], 256
        $region84: #{tpu_custom_call.1} parent=75 // pred_fallthru
          _
        // Predicated region
        $region85: #{tpu_custom_call.1} parent=75 // pred_check
          %p605 = pneg %p177
        $region86: #{tpu_custom_call.1} parent=75 // pred_check_branch
          %607 = sbr.rel (%p605) target = $region88
        $region87: #{tpu_custom_call.1} parent=75 // pred_region
          %608 = dma.done [#allocation12], 256
        $region88: #{tpu_custom_call.1} parent=75 // pred_fallthru
          _
        // Predicated region
        $region89: #{tpu_custom_call.1} parent=75 // pred_check
          %p609 = pneg %p198
        $region90: #{tpu_custom_call.1} parent=75 // pred_check_branch
          %611 = sbr.rel (%p609) target = $region92
        $region91: #{tpu_custom_call.1} parent=75 // pred_region
          %612 = dma.done [#allocation15], 512
        $region92: #{tpu_custom_call.1} parent=75 // pred_fallthru
          _
        // Predicated region
        $region93: #{tpu_custom_call.1} parent=75 // pred_check
          %p613 = pneg %p240
        $region94: #{tpu_custom_call.1} parent=75 // pred_check_branch
          %615 = sbr.rel (%p613) target = $region96
        $region95: #{tpu_custom_call.1} parent=75 // pred_region
          %616 = dma.done [#allocation15], 512
        $region96: #{tpu_custom_call.1} parent=75 // pred_fallthru
          _
        // Predicated region
        $region97: #{tpu_custom_call.1} parent=75 // pred_check
          %p617 = pneg %p282
        $region98: #{tpu_custom_call.1} parent=75 // pred_check_branch
          %619 = sbr.rel (%p617) target = $region100
        $region99: #{tpu_custom_call.1} parent=75 // pred_region
          %620 = dma.done [#allocation18], 1024
        $region100: #{tpu_custom_call.1} parent=75 // pred_fallthru
          _
        %s621 = sand.u32 %s60, 1
        %s622 = scalar_lea.sflag [#allocation9], %s621
        %s623 = sand.u32 %s60, 1
        %s624 = scalar_lea.vmem [#allocation8], %s623
        %p625 = pneg %p73
        %p626 = pneg %p70
        %p627 = scmp.lt.s32.totalorder %s42, 0
        %s628 = scalar_select %p627, %s42, 0
        %s629 = smul.addr %s628, 2
        %s630 = scalar_lea.vmem %s1, %s629
        %p631 = pneg %p99
        %p632 = pneg %p96
        %p633 = pneg %p125
        %p634 = pneg %p122
        %p635 = scmp.lt.s32.totalorder %s42, 0
        %s636 = scalar_select %p635, %s42, 0
        %s637 = smul.addr %s636, 2
        %s638 = scalar_lea.vmem %s3, %s637
        %p639 = pneg %p151
        %p640 = pneg %p148
        %p641 = pneg %p177
        %p642 = pneg %p174
        %p643 = pneg %p198
        %p644 = pneg %p195
        %p645 = pneg %p219
        %p646 = pneg %p216
        %p647 = pneg %p240
        %p648 = pneg %p237
        %p649 = pneg %p261
        %p650 = pneg %p258
        %p651 = pneg %p282
        %p652 = pneg %p279
        %p653 = pneg %p303
        %p654 = pneg %p300
        %p655 = pneg %p324
        %p656 = pneg %p321
        %p657 = pneg %p345
        %p658 = pneg %p342
        %p659 = pneg %p366
        %p660 = pneg %p363
        %p661 = pneg %p394
        %p662 = pneg %p391
        %s663 = sand.u32 %s381, 1
        %s664 = scalar_lea.sflag [#allocation10], %s663
        %s665 = sand.u32 %s381, 1
        %s666 = smul.addr %s665, 2
        %s667 = scalar_lea.vmem [#allocation19], %s666
        %p668 = pneg %p420
        %p669 = pneg %p417
        %p670 = pneg %p446
        %p671 = pneg %p443
        %p672 = scmp.lt.s32.totalorder %s42, 0
        %s673 = scalar_select %p672, %s42, 0
        %s674 = smul.addr %s673, 2
        %s675 = scalar_lea.vmem %s1, %s674
        %s676 = smul.u32 2, %s42
        %p677 = scmp.lt.s32.totalorder %s42, 0
        %s678 = scalar_select %p677, %s42, 0
        %s679 = smul.addr %s678, 2
        %s680 = scalar_lea.vmem %s3, %s679
        %s681 = smul.u32 2, %s42
        %p682 = scmp.eq.s32.totalorder %s43, 0
        // Predicated region
        $region101: #{tpu_custom_call.1} parent=75 // pred_check
          %p683 = pneg %p682
        $region102: #{tpu_custom_call.1} parent=75 // pred_check_branch
          %685 = sbr.rel (%p683) target = $region104
        $region103: #{tpu_custom_call.1} parent=75 // pred_region
          %v686 = vld [vmem:[#allocation13] sm:$0xff]
          %v687 = vld [vmem:[#allocation13 + $0x8] sm:$0xff]
          %v688 = vld [vmem:[%s11] sm:$0xff]
          %v689 = vld [vmem:[%s11 + $0x8] sm:$0xff]
          %v690 = vld [vmem:[%s11 + $0x10] sm:$0xff]
          %v691 = vld [vmem:[%s11 + $0x18] sm:$0xff]
          %v692 = vld [vmem:[%s12] sm:$0x1]
          %v694 = vlaneseq
          %v695 = vshrl.u32 %v694, 7
          %v696 = vsub.s32 0, %v695
          %v697 = vrot.slane %v692, %v696
          %vm699 = vcmask 261120
          %v701 = vsel %vm699, %v686, 0
          %v704 = vsel %vm699, %v687, 0
          %706 = vmatprep.subr.mxu0 0.0
          %707 = vmatpush1.msra.mxu0 %v688
          %708 = vmatprep.subr.mxu0 0.0
          %709 = vmatpush1.msra.mxu0 %v689
          %710 = vmatprep.subr.mxu0 0.0
          %711 = vmatpush1.msra.mxu0 %v690
          %712 = vmatprep.subr.mxu0 0.0
          %713 = vmatpush1.msra.mxu0 %v691
          %714 = vmatprep.subr.mxu0 0.0
          %715 = vmatpush1.msra.mxu0 0.0
          %716 = vmatprep.subr.mxu0 0.0
          %717 = vmatpush1.msra.mxu0 0.0
          %718 = vmatprep.subr.mxu0 0.0
          %719 = vmatpush1.msra.mxu0 0.0
          %720 = vmatprep.subr.mxu0 0.0
          %721 = vmatpush1.msra.mxu0 0.0
          %722 = vmatprep.subr.mxu0 0.0
          %723 = vmatpush1.msra.mxu0 0.0
          %724 = vmatprep.subr.mxu0 0.0
          %725 = vmatpush1.msra.mxu0 0.0
          %726 = vmatprep.subr.mxu0 0.0
          %727 = vmatpush1.msra.mxu0 0.0
          %728 = vmatprep.subr.mxu0 0.0
          %729 = vmatpush1.msra.mxu0 0.0
          %730 = vmatprep.subr.mxu0 0.0
          %731 = vmatpush1.msra.mxu0 0.0
          %732 = vmatprep.subr.mxu0 0.0
          %733 = vmatpush1.msra.mxu0 0.0
          %734 = vmatprep.subr.mxu0 0.0
          %735 = vmatpush1.msra.mxu0 0.0
          %736 = vmatprep.subr.mxu0 0.0
          %737 = vmatpush1.msra.mxu0 0.0
          %738 = vmatprep.subr.mxu0 0.0
          %739 = vmatpush1.msra.mxu0 0.0
          %740 = vmatprep.subr.mxu0 0.0
          %741 = vmatpush1.msra.mxu0 0.0
          %742 = vmatprep.subr.mxu0 0.0
          %743 = vmatpush1.msra.mxu0 0.0
          %744 = vmatprep.subr.mxu0 0.0
          %745 = vmatpush1.msra.mxu0 0.0
          %746 = vmatprep.subr.mxu0 0.0
          %747 = vmatpush1.msra.mxu0 0.0
          %748 = vmatprep.subr.mxu0 0.0
          %749 = vmatpush1.msra.mxu0 0.0
          %750 = vmatprep.subr.mxu0 0.0
          %751 = vmatpush1.msra.mxu0 0.0
          %752 = vmatprep.subr.mxu0 0.0
          %753 = vmatpush1.msra.mxu0 0.0
          %754 = vmatprep.subr.mxu0 0.0
          %755 = vmatpush1.msra.mxu0 0.0
          %756 = vmatprep.subr.mxu0 0.0
          %757 = vmatpush1.msra.mxu0 0.0
          %758 = vmatprep.subr.mxu0 0.0
          %759 = vmatpush1.msra.mxu0 0.0
          %760 = vmatprep.subr.mxu0 0.0
          %761 = vmatpush1.msra.mxu0 0.0
          %762 = vmatprep.subr.mxu0 0.0
          %763 = vmatpush1.msra.mxu0 0.0
          %764 = vmatprep.subr.mxu0 0.0
          %765 = vmatpush1.msra.mxu0 0.0
          %766 = vmatprep.subr.mxu0 0.0
          %767 = vmatpush1.msra.mxu0 0.0
          %768 = vmatprep.subr.mxu0 0.0
          %769 = vmatpush1.msra.mxu0 0.0
          %770 = vmatprep.mubr.f32.mxu0 0.0
          %771 = vmatmul.mubr.f32.gmra.mrb[0].mxu0 %v701
          %v772 = vpop.f32.mrb[0].mxu0
          %v773 = vadd.f32 %v697, %v772
          %v774 = vpop.f32.mrb[0].mxu0
          %775 = vmatprep.mubr.f32.mxu0 0.0
          %776 = vmatmul.mubr.f32.gmra.mrb[0].mxu0 %v704
          %v777 = vpop.f32.mrb[0].mxu0
          %v778 = vadd.f32 %v697, %v777
          %v779 = vpop.f32.mrb[0].mxu0
          %780 = vdwg.mxu0
          %781 = vst.msk [vmem:[#allocation2] sm:$0xff] %vm699, %v773
          %782 = vst.msk [vmem:[#allocation2 + $0x8] sm:$0xff] %vm699, %v778
          %785 = vrot.lane.b32.xlu0 %v773, 96
          %v786 = vpop.permute.xlu0 %785
          %787 = vrot.lane.b32.xlu0 %v778, 96
          %v788 = vpop.permute.xlu0 %787
          %791 = vst.msk [vmem:[#allocation3] sm:$0xff] %vm699, %v786
          %792 = vst.msk [vmem:[#allocation3 + $0x8] sm:$0xff] %vm699, %v788
          %v793 = vld [vmem:[#allocation11] sm:$0xff]
          %v794 = vld [vmem:[#allocation11 + $0x8] sm:$0xff]
          %v795 = vld [vmem:[#allocation14] sm:$0xff]
          %v796 = vld [vmem:[#allocation14 + $0x8] sm:$0xff]
          %v797 = vld [vmem:[#allocation14 + $0x10] sm:$0xff]
          %v798 = vld [vmem:[#allocation14 + $0x18] sm:$0xff]
          %v799 = vld [vmem:[%s6] sm:$0x1]
          %v801 = vlaneseq
          %v802 = vshrl.u32 %v801, 7
          %v803 = vsub.s32 0, %v802
          %v804 = vrot.slane %v799, %v803
          %v807 = vsel %vm699, %v793, 0
          %v810 = vsel %vm699, %v794, 0
          %812 = vmatprep.subr.mxu0 0.0
          %813 = vmatpush1.msra.mxu0 %v795
          %814 = vmatprep.subr.mxu0 0.0
          %815 = vmatpush1.msra.mxu0 %v796
          %816 = vmatprep.subr.mxu0 0.0
          %817 = vmatpush1.msra.mxu0 %v797
          %818 = vmatprep.subr.mxu0 0.0
          %819 = vmatpush1.msra.mxu0 %v798
          %820 = vmatprep.subr.mxu0 0.0
          %821 = vmatpush1.msra.mxu0 0.0
          %822 = vmatprep.subr.mxu0 0.0
          %823 = vmatpush1.msra.mxu0 0.0
          %824 = vmatprep.subr.mxu0 0.0
          %825 = vmatpush1.msra.mxu0 0.0
          %826 = vmatprep.subr.mxu0 0.0
          %827 = vmatpush1.msra.mxu0 0.0
          %828 = vmatprep.subr.mxu0 0.0
          %829 = vmatpush1.msra.mxu0 0.0
          %830 = vmatprep.subr.mxu0 0.0
          %831 = vmatpush1.msra.mxu0 0.0
          %832 = vmatprep.subr.mxu0 0.0
          %833 = vmatpush1.msra.mxu0 0.0
          %834 = vmatprep.subr.mxu0 0.0
          %835 = vmatpush1.msra.mxu0 0.0
          %836 = vmatprep.subr.mxu0 0.0
          %837 = vmatpush1.msra.mxu0 0.0
          %838 = vmatprep.subr.mxu0 0.0
          %839 = vmatpush1.msra.mxu0 0.0
          %840 = vmatprep.subr.mxu0 0.0
          %841 = vmatpush1.msra.mxu0 0.0
          %842 = vmatprep.subr.mxu0 0.0
          %843 = vmatpush1.msra.mxu0 0.0
          %844 = vmatprep.subr.mxu0 0.0
          %845 = vmatpush1.msra.mxu0 0.0
          %846 = vmatprep.subr.mxu0 0.0
          %847 = vmatpush1.msra.mxu0 0.0
          %848 = vmatprep.subr.mxu0 0.0
          %849 = vmatpush1.msra.mxu0 0.0
          %850 = vmatprep.subr.mxu0 0.0
          %851 = vmatpush1.msra.mxu0 0.0
          %852 = vmatprep.subr.mxu0 0.0
          %853 = vmatpush1.msra.mxu0 0.0
          %854 = vmatprep.subr.mxu0 0.0
          %855 = vmatpush1.msra.mxu0 0.0
          %856 = vmatprep.subr.mxu0 0.0
          %857 = vmatpush1.msra.mxu0 0.0
          %858 = vmatprep.subr.mxu0 0.0
          %859 = vmatpush1.msra.mxu0 0.0
          %860 = vmatprep.subr.mxu0 0.0
          %861 = vmatpush1.msra.mxu0 0.0
          %862 = vmatprep.subr.mxu0 0.0
          %863 = vmatpush1.msra.mxu0 0.0
          %864 = vmatprep.subr.mxu0 0.0
          %865 = vmatpush1.msra.mxu0 0.0
          %866 = vmatprep.subr.mxu0 0.0
          %867 = vmatpush1.msra.mxu0 0.0
          %868 = vmatprep.subr.mxu0 0.0
          %869 = vmatpush1.msra.mxu0 0.0
          %870 = vmatprep.subr.mxu0 0.0
          %871 = vmatpush1.msra.mxu0 0.0
          %872 = vmatprep.subr.mxu0 0.0
          %873 = vmatpush1.msra.mxu0 0.0
          %874 = vmatprep.subr.mxu0 0.0
          %875 = vmatpush1.msra.mxu0 0.0
          %876 = vmatprep.mubr.f32.mxu0 0.0
          %877 = vmatmul.mubr.f32.gmra.mrb[0].mxu0 %v807
          %v878 = vpop.f32.mrb[0].mxu0
          %v879 = vadd.f32 %v804, %v878
          %v880 = vpop.f32.mrb[0].mxu0
          %881 = vmatprep.mubr.f32.mxu0 0.0
          %882 = vmatmul.mubr.f32.gmra.mrb[0].mxu0 %v810
          %v883 = vpop.f32.mrb[0].mxu0
          %v884 = vadd.f32 %v804, %v883
          %v885 = vpop.f32.mrb[0].mxu0
          %886 = vdwg.mxu0
          %vm887 = vcmask 785408
          %888 = vst.msk [vmem:[#allocation4] sm:$0xff] %vm887, %v879
          %889 = vst.msk [vmem:[#allocation4 + $0x8] sm:$0xff] %vm887, %v884
          %v890 = vld [vmem:[%s675] sm:$0x3]
          %v891 = vld [vmem:[#allocation14] sm:$0xff]
          %v892 = vld [vmem:[#allocation14 + $0x8] sm:$0xff]
          %v893 = vld [vmem:[#allocation14 + $0x10] sm:$0xff]
          %v894 = vld [vmem:[#allocation14 + $0x18] sm:$0xff]
          %v895 = vld [vmem:[%s6] sm:$0x1]
          %v897 = vlaneseq
          %v898 = vshrl.u32 %v897, 7
          %v899 = vsub.s32 0, %v898
          %v900 = vrot.slane %v895, %v899
          %v903 = vsel %vm699, %v890, 0
          %905 = vmatprep.subr.mxu0 0.0
          %906 = vmatpush1.msra.mxu0 %v891
          %907 = vmatprep.subr.mxu0 0.0
          %908 = vmatpush1.msra.mxu0 %v892
          %909 = vmatprep.subr.mxu0 0.0
          %910 = vmatpush1.msra.mxu0 %v893
          %911 = vmatprep.subr.mxu0 0.0
          %912 = vmatpush1.msra.mxu0 %v894
          %913 = vmatprep.subr.mxu0 0.0
          %914 = vmatpush1.msra.mxu0 0.0
          %915 = vmatprep.subr.mxu0 0.0
          %916 = vmatpush1.msra.mxu0 0.0
          %917 = vmatprep.subr.mxu0 0.0
          %918 = vmatpush1.msra.mxu0 0.0
          %919 = vmatprep.subr.mxu0 0.0
          %920 = vmatpush1.msra.mxu0 0.0
          %921 = vmatprep.subr.mxu0 0.0
          %922 = vmatpush1.msra.mxu0 0.0
          %923 = vmatprep.subr.mxu0 0.0
          %924 = vmatpush1.msra.mxu0 0.0
          %925 = vmatprep.subr.mxu0 0.0
          %926 = vmatpush1.msra.mxu0 0.0
          %927 = vmatprep.subr.mxu0 0.0
          %928 = vmatpush1.msra.mxu0 0.0
          %929 = vmatprep.subr.mxu0 0.0
          %930 = vmatpush1.msra.mxu0 0.0
          %931 = vmatprep.subr.mxu0 0.0
          %932 = vmatpush1.msra.mxu0 0.0
          %933 = vmatprep.subr.mxu0 0.0
          %934 = vmatpush1.msra.mxu0 0.0
          %935 = vmatprep.subr.mxu0 0.0
          %936 = vmatpush1.msra.mxu0 0.0
          %937 = vmatprep.subr.mxu0 0.0
          %938 = vmatpush1.msra.mxu0 0.0
          %939 = vmatprep.subr.mxu0 0.0
          %940 = vmatpush1.msra.mxu0 0.0
          %941 = vmatprep.subr.mxu0 0.0
          %942 = vmatpush1.msra.mxu0 0.0
          %943 = vmatprep.subr.mxu0 0.0
          %944 = vmatpush1.msra.mxu0 0.0
          %945 = vmatprep.subr.mxu0 0.0
          %946 = vmatpush1.msra.mxu0 0.0
          %947 = vmatprep.subr.mxu0 0.0
          %948 = vmatpush1.msra.mxu0 0.0
          %949 = vmatprep.subr.mxu0 0.0
          %950 = vmatpush1.msra.mxu0 0.0
          %951 = vmatprep.subr.mxu0 0.0
          %952 = vmatpush1.msra.mxu0 0.0
          %953 = vmatprep.subr.mxu0 0.0
          %954 = vmatpush1.msra.mxu0 0.0
          %955 = vmatprep.subr.mxu0 0.0
          %956 = vmatpush1.msra.mxu0 0.0
          %957 = vmatprep.subr.mxu0 0.0
          %958 = vmatpush1.msra.mxu0 0.0
          %959 = vmatprep.subr.mxu0 0.0
          %960 = vmatpush1.msra.mxu0 0.0
          %961 = vmatprep.subr.mxu0 0.0
          %962 = vmatpush1.msra.mxu0 0.0
          %963 = vmatprep.subr.mxu0 0.0
          %964 = vmatpush1.msra.mxu0 0.0
          %965 = vmatprep.subr.mxu0 0.0
          %966 = vmatpush1.msra.mxu0 0.0
          %967 = vmatprep.subr.mxu0 0.0
          %968 = vmatpush1.msra.mxu0 0.0
          %969 = vmatprep.mubr.f32.mxu0 0.0
          %970 = vmatmul.mubr.f32.gmra.mrb[0].mxu0 %v903
          %v971 = vpop.f32.mrb[0].mxu0
          %v972 = vadd.f32 %v900, %v971
          %v973 = vpop.f32.mrb[0].mxu0
          %974 = vdwg.mxu0
          %vm975 = vcmask 779264
          %976 = vst.msk [vmem:[#allocation5] sm:$0x3] %vm975, %v972
          %v977 = vld [vmem:[%s680] sm:$0x3]
          %vm978 = vcmask 254976
          %979 = vst.msk [vmem:[#allocation6] sm:$0x3] %vm978, %v977
          %vm980 = vcmask 58368
          %981 = vst.msk [vmem:[#allocation7] sm:$0x3] %vm980, 0.0
          %982 = vst.msk [vmem:[#allocation20] sm:$0x3] %vm980, 0
        $region104: #{tpu_custom_call.1} parent=75 // pred_fallthru
          _
        %v983 = vld [vmem:[#allocation6] sm:$0x3]
        %v984 = vld [vmem:[#allocation5] sm:$0x3]
        %v985 = vld [vmem:[#allocation16] sm:$0xff]
        %v986 = vld [vmem:[#allocation16 + $0x8] sm:$0xff]
        %v987 = vld [vmem:[#allocation16 + $0x10] sm:$0xff]
        %v988 = vld [vmem:[#allocation16 + $0x18] sm:$0xff]
        %v989 = vld [vmem:[%s8] sm:$0x1]
        %v991 = vlaneseq
        %v992 = vshrl.u32 %v991, 7
        %v993 = vsub.s32 0, %v992
        %v994 = vrot.slane %v989, %v993
        %vm996 = vcmask 261120
        %v998 = vsel %vm996, %v983, 0
        %1000 = vmatprep.subr.mxu0 0.0
        %1001 = vmatpush1.msra.mxu0 %v985
        %1002 = vmatprep.subr.mxu0 0.0
        %1003 = vmatpush1.msra.mxu0 %v986
        %1004 = vmatprep.subr.mxu0 0.0
        %1005 = vmatpush1.msra.mxu0 %v987
        %1006 = vmatprep.subr.mxu0 0.0
        %1007 = vmatpush1.msra.mxu0 %v988
        %1008 = vmatprep.subr.mxu0 0.0
        %1009 = vmatpush1.msra.mxu0 0.0
        %1010 = vmatprep.subr.mxu0 0.0
        %1011 = vmatpush1.msra.mxu0 0.0
        %1012 = vmatprep.subr.mxu0 0.0
        %1013 = vmatpush1.msra.mxu0 0.0
        %1014 = vmatprep.subr.mxu0 0.0
        %1015 = vmatpush1.msra.mxu0 0.0
        %1016 = vmatprep.subr.mxu0 0.0
        %1017 = vmatpush1.msra.mxu0 0.0
        %1018 = vmatprep.subr.mxu0 0.0
        %1019 = vmatpush1.msra.mxu0 0.0
        %1020 = vmatprep.subr.mxu0 0.0
        %1021 = vmatpush1.msra.mxu0 0.0
        %1022 = vmatprep.subr.mxu0 0.0
        %1023 = vmatpush1.msra.mxu0 0.0
        %1024 = vmatprep.subr.mxu0 0.0
        %1025 = vmatpush1.msra.mxu0 0.0
        %1026 = vmatprep.subr.mxu0 0.0
        %1027 = vmatpush1.msra.mxu0 0.0
        %1028 = vmatprep.subr.mxu0 0.0
        %1029 = vmatpush1.msra.mxu0 0.0
        %1030 = vmatprep.subr.mxu0 0.0
        %1031 = vmatpush1.msra.mxu0 0.0
        %1032 = vmatprep.subr.mxu0 0.0
        %1033 = vmatpush1.msra.mxu0 0.0
        %1034 = vmatprep.subr.mxu0 0.0
        %1035 = vmatpush1.msra.mxu0 0.0
        %1036 = vmatprep.subr.mxu0 0.0
        %1037 = vmatpush1.msra.mxu0 0.0
        %1038 = vmatprep.subr.mxu0 0.0
        %1039 = vmatpush1.msra.mxu0 0.0
        %1040 = vmatprep.subr.mxu0 0.0
        %1041 = vmatpush1.msra.mxu0 0.0
        %1042 = vmatprep.subr.mxu0 0.0
        %1043 = vmatpush1.msra.mxu0 0.0
        %1044 = vmatprep.subr.mxu0 0.0
        %1045 = vmatpush1.msra.mxu0 0.0
        %1046 = vmatprep.subr.mxu0 0.0
        %1047 = vmatpush1.msra.mxu0 0.0
        %1048 = vmatprep.subr.mxu0 0.0
        %1049 = vmatpush1.msra.mxu0 0.0
        %1050 = vmatprep.subr.mxu0 0.0
        %1051 = vmatpush1.msra.mxu0 0.0
        %1052 = vmatprep.subr.mxu0 0.0
        %1053 = vmatpush1.msra.mxu0 0.0
        %1054 = vmatprep.subr.mxu0 0.0
        %1055 = vmatpush1.msra.mxu0 0.0
        %1056 = vmatprep.subr.mxu0 0.0
        %1057 = vmatpush1.msra.mxu0 0.0
        %1058 = vmatprep.subr.mxu0 0.0
        %1059 = vmatpush1.msra.mxu0 0.0
        %1060 = vmatprep.subr.mxu0 0.0
        %1061 = vmatpush1.msra.mxu0 0.0
        %1062 = vmatprep.subr.mxu0 0.0
        %1063 = vmatpush1.msra.mxu0 0.0
        %1064 = vmatprep.mubr.f32.mxu0 0.0
        %1065 = vmatmul.mubr.f32.gmra.mrb[0].mxu0 %v998
        %v1066 = vpop.f32.mrb[0].mxu0
        %v1067 = vadd.f32 %v994, %v1066
        %v1068 = vpop.f32.mrb[0].mxu0
        %1069 = vdwg.mxu0
        %v1070 = vadd.f32 %v984, %v1067
        %v1071 = vxor.u32 %v1070, 2147483648
        %v1072 = vmul.f32 %v1071, 1.442695
        %v1073 = vpow.pop %v1072
        %v1074 = vadd.f32 %v1073, 1.0
        %v1075 = vrcp.pop %v1074
        %v1076 = vmul.f32 1.0, %v1075
        %1078 = vrot.lane.b32.xlu0 %v1067, 64
        %v1079 = vpop.permute.xlu0 %1078
        %v1081 = vmul.f32 %v1076, %v1079
        %1083 = vrot.lane.b32.xlu0 %v1081, 64
        %v1084 = vpop.permute.xlu0 %1083
        %v1086 = vadd.f32 %v984, %v1084
        %v1087 = vtanh.pop %v1086
        %v1088 = vsub.f32 1.0, %v1076
        %1090 = vrot.lane.b32.xlu0 %v1087, 96
        %v1091 = vpop.permute.xlu0 %1090
        %v1093 = vmul.f32 %v1088, %v1091
        %1094 = vrot.lane.b32.xlu0 %v983, 32
        %v1095 = vpop.permute.xlu0 %1094
        %v1097 = vmul.f32 %v1076, %v1095
        %v1098 = vadd.f32 %v1093, %v1097
        %v1099 = vld [vmem:[#allocation7] sm:$0x3]
        %v1100 = vld [vmem:[#allocation17] sm:$0xff]
        %v1101 = vld [vmem:[#allocation17 + $0x8] sm:$0xff]
        %v1102 = vld [vmem:[#allocation17 + $0x10] sm:$0xff]
        %v1103 = vld [vmem:[#allocation17 + $0x18] sm:$0xff]
        %s1104 = scalar_lea.vmem [#allocation17], 32
        %v1105 = vld [vmem:[%s1104] sm:$0xff]
        %v1106 = vld [vmem:[%s1104 + $0x8] sm:$0xff]
        %v1107 = vld [vmem:[%s1104 + $0x10] sm:$0xff]
        %v1108 = vld [vmem:[%s1104 + $0x18] sm:$0xff]
        %v1109 = vld [vmem:[%s13] sm:$0x1]
        %s1110 = scalar_lea.vmem %s13, 1
        %v1111 = vld [vmem:[%s1110] sm:$0x1]
        %v1112 = vld [vmem:[%s10] sm:$0x1]
        %v1114 = vlaneseq
        %v1115 = vshrl.u32 %v1114, 7
        %v1116 = vsub.s32 0, %v1115
        %v1117 = vrot.slane %v1112, %v1116
        %1120 = vrot.lane.b32.xlu0 %v1098, 96
        %v1121 = vpop.permute.xlu0 %1120
        %v1122 = vsel %vm996, %v1121, 0
        %1124 = vmatprep.subr.mxu0 0.0
        %1125 = vmatpush1.msra.mxu0 %v1100
        %1126 = vmatprep.subr.mxu0 0.0
        %1127 = vmatpush1.msra.mxu0 %v1101
        %1128 = vmatprep.subr.mxu0 0.0
        %1129 = vmatpush1.msra.mxu0 %v1102
        %1130 = vmatprep.subr.mxu0 0.0
        %1131 = vmatpush1.msra.mxu0 %v1103
        %1132 = vmatprep.subr.mxu0 0.0
        %1133 = vmatpush1.msra.mxu0 0.0
        %1134 = vmatprep.subr.mxu0 0.0
        %1135 = vmatpush1.msra.mxu0 0.0
        %1136 = vmatprep.subr.mxu0 0.0
        %1137 = vmatpush1.msra.mxu0 0.0
        %1138 = vmatprep.subr.mxu0 0.0
        %1139 = vmatpush1.msra.mxu0 0.0
        %1140 = vmatprep.subr.mxu0 0.0
        %1141 = vmatpush1.msra.mxu0 0.0
        %1142 = vmatprep.subr.mxu0 0.0
        %1143 = vmatpush1.msra.mxu0 0.0
        %1144 = vmatprep.subr.mxu0 0.0
        %1145 = vmatpush1.msra.mxu0 0.0
        %1146 = vmatprep.subr.mxu0 0.0
        %1147 = vmatpush1.msra.mxu0 0.0
        %1148 = vmatprep.subr.mxu0 0.0
        %1149 = vmatpush1.msra.mxu0 0.0
        %1150 = vmatprep.subr.mxu0 0.0
        %1151 = vmatpush1.msra.mxu0 0.0
        %1152 = vmatprep.subr.mxu0 0.0
        %1153 = vmatpush1.msra.mxu0 0.0
        %1154 = vmatprep.subr.mxu0 0.0
        %1155 = vmatpush1.msra.mxu0 0.0
        %1156 = vmatprep.subr.mxu0 0.0
        %1157 = vmatpush1.msra.mxu0 0.0
        %1158 = vmatprep.subr.mxu0 0.0
        %1159 = vmatpush1.msra.mxu0 0.0
        %1160 = vmatprep.subr.mxu0 0.0
        %1161 = vmatpush1.msra.mxu0 0.0
        %1162 = vmatprep.subr.mxu0 0.0
        %1163 = vmatpush1.msra.mxu0 0.0
        %1164 = vmatprep.subr.mxu0 0.0
        %1165 = vmatpush1.msra.mxu0 0.0
        %1166 = vmatprep.subr.mxu0 0.0
        %1167 = vmatpush1.msra.mxu0 0.0
        %1168 = vmatprep.subr.mxu0 0.0
        %1169 = vmatpush1.msra.mxu0 0.0
        %1170 = vmatprep.subr.mxu0 0.0
        %1171 = vmatpush1.msra.mxu0 0.0
        %1172 = vmatprep.subr.mxu0 0.0
        %1173 = vmatpush1.msra.mxu0 0.0
        %1174 = vmatprep.subr.mxu0 0.0
        %1175 = vmatpush1.msra.mxu0 0.0
        %1176 = vmatprep.subr.mxu0 0.0
        %1177 = vmatpush1.msra.mxu0 0.0
        %1178 = vmatprep.subr.mxu0 0.0
        %1179 = vmatpush1.msra.mxu0 0.0
        %1180 = vmatprep.subr.mxu0 0.0
        %1181 = vmatpush1.msra.mxu0 0.0
        %1182 = vmatprep.subr.mxu0 0.0
        %1183 = vmatpush1.msra.mxu0 0.0
        %1184 = vmatprep.subr.mxu0 0.0
        %1185 = vmatpush1.msra.mxu0 0.0
        %1186 = vmatprep.subr.mxu0 0.0
        %1187 = vmatpush1.msra.mxu0 0.0
        %1188 = vmatprep.mubr.f32.mxu0 0.0
        %1189 = vmatmul.mubr.f32.gmra.mrb[0].mxu0 %v1122
        %v1190 = vpop.f32.mrb[0].mxu0
        %v1191 = vadd.f32 %v1117, %v1190
        %v1192 = vpop.f32.mrb[0].mxu0
        %1193 = vdwg.mxu0
        %v1196 = vunpack.c.l.s4 1966171168
        %v1197 = vunpack.c.0.s8 %v1196
        %v1198 = vlaneseq
        %v1199 = vshrl.u32 %v1198, 7
        %v1200 = vsub.s32 %v1197, %v1199
        %v1201 = vrot.slane %v1191, %v1200
        %v1202 = vcombine.high %v1201, %v1201
        %v1204 = vunpack.c.l.s4 1966171168
        %v1205 = vunpack.c.0.s8 %v1204
        %v1206 = vlaneseq
        %v1207 = vshrl.u32 %v1206, 7
        %v1208 = vsub.s32 %v1205, %v1207
        %v1209 = vrot.slane %v1201, %v1208
        %v1211 = vunpack.c.l.s4 1966171168
        %v1212 = vunpack.c.0.s8 %v1211
        %v1213 = vlaneseq
        %v1214 = vshrl.u32 %v1213, 7
        %v1215 = vsub.s32 %v1212, %v1214
        %v1216 = vrot.slane %v1202, %v1215
        %v1217 = vld [vmem:[#allocation2] sm:$0xff]
        %v1218 = vld [vmem:[#allocation2 + $0x8] sm:$0xff]
        %v1219 = vlaneseq
        %v1220 = vshrl.u32 %v1219, 7
        %v1221 = vsub.s32 0, %v1220
        %v1222 = vrot.slane %v1209, %v1221
        %v1223 = vlaneseq
        %v1224 = vshrl.u32 %v1223, 7
        %v1225 = vsub.s32 0, %v1224
        %v1226 = vrot.slane %v1216, %v1225
        %v1229 = vadd.f32 %v1222, %v1217
        %v1230 = vadd.f32 %v1226, %v1218
        %v1231 = vtanh.pop %v1229
        %v1232 = vtanh.pop %v1230
        %v1234 = vlaneseq
        %v1235 = vshrl.u32 %v1234, 7
        %v1236 = vsub.s32 0, %v1235
        %v1237 = vrot.slane %v1109, %v1236
        %v1239 = vmul.f32 %v1231, %v1237
        %v1240 = vmul.f32 %v1232, %v1237
        %v1241 = vsel %vm996, %v1239, 0.0
        %1242 = vadd.xlane.f32.xlu0 %v1241
        %v1243 = vpop.xlane.xlu0 %1242
        %v1244 = vsel %vm996, %v1240, 0.0
        %1245 = vadd.xlane.f32.xlu0 %v1244
        %v1246 = vpop.xlane.xlu0 %1245
        %v1248 = vlaneseq
        %v1249 = vshrl.u32 %v1248, 7
        %v1250 = vsub.s32 0, %v1249
        %v1251 = vrot.slane %v1099, %v1250
        %1253 = vbcast.lane.b32.xlu0 %v1251, 256
        %v1254 = vpop.permute.xlu0 %1253
        %v1255 = vlaneseq
        %v1256 = vshrl.u32 %v1255, 7
        %v1257 = vsub.s32 1, %v1256
        %v1258 = vrot.slane %v1099, %v1257
        %1260 = vbcast.lane.b32.xlu0 %v1258, 256
        %v1261 = vpop.permute.xlu0 %1260
        %v1264 = vadd.f32 %v1243, %v1254
        %v1265 = vadd.f32 %v1246, %v1261
        %1268 = vset.pattern.permute.xlu0 0
        %1269 = vperm.xlu0 %1268, %v1264
        %v1270 = vpop.permute.xlu0 %1269
        %1271 = vset.pattern.permute.xlu0 0
        %1272 = vperm.xlu0 %1271, %v1265
        %v1273 = vpop.permute.xlu0 %1272
        %v1274 = vlaneseq
        %v1275 = vand.u32 %v1274, 127
        %v1276 = vlaneseq
        %v1277 = vshrl.u32 %v1276, 7
        %v1278 = vsub.s32 %v1275, %v1277
        %v1279 = vrot.slane %v1270, %v1278
        %v1280 = vlaneseq
        %v1281 = vshrl.u32 %v1280, 7
        %v1282 = vsub.s32 %v1275, %v1281
        %v1283 = vrot.slane %v1273, %v1282
        %vm1284 = vcmask 1041409
        %v1285 = vsel %vm1284, %v1283, %v1279
        %vm1287 = vcmask 58368
        %v1288 = vsel %vm1287, %v1285, -inf
        %1289 = vmax.xlane.f32.xlu0 %v1288
        %v1290 = vpop.xlane.xlu0 %1289
        %v1292 = vlaneseq
        %v1293 = vshrl.u32 %v1292, 7
        %v1294 = vsub.s32 0, %v1293
        %v1295 = vrot.slane %v1290, %v1294
        %v1296 = vlaneseq
        %v1297 = vshrl.u32 %v1296, 7
        %v1298 = vsub.s32 1, %v1297
        %v1299 = vrot.slane %v1290, %v1298
        %v1302 = vsub.f32 %v1264, %v1295
        %v1303 = vsub.f32 %v1265, %v1299
        %v1304 = vmul.f32 %v1302, 1.442695
        %v1305 = vpow.pop %v1304
        %v1306 = vmul.f32 %v1303, 1.442695
        %v1307 = vpow.pop %v1306
        %1310 = vset.pattern.permute.xlu0 0
        %1311 = vperm.xlu0 %1310, %v1305
        %v1312 = vpop.permute.xlu0 %1311
        %1313 = vset.pattern.permute.xlu0 0
        %1314 = vperm.xlu0 %1313, %v1307
        %v1315 = vpop.permute.xlu0 %1314
        %v1316 = vlaneseq
        %v1317 = vshrl.u32 %v1316, 7
        %v1318 = vsub.s32 %v1275, %v1317
        %v1319 = vrot.slane %v1312, %v1318
        %v1320 = vlaneseq
        %v1321 = vshrl.u32 %v1320, 7
        %v1322 = vsub.s32 %v1275, %v1321
        %v1323 = vrot.slane %v1315, %v1322
        %v1324 = vsel %vm1284, %v1323, %v1319
        %v1326 = vsel %vm1287, %v1324, 0.0
        %1327 = vadd.xlane.f32.xlu0 %v1326
        %v1328 = vpop.xlane.xlu0 %1327
        %v1329 = vrcp.pop %v1328
        %v1330 = vmul.f32 1.0, %v1329
        %v1332 = vlaneseq
        %v1333 = vshrl.u32 %v1332, 7
        %v1334 = vsub.s32 0, %v1333
        %v1335 = vrot.slane %v1330, %v1334
        %v1336 = vlaneseq
        %v1337 = vshrl.u32 %v1336, 7
        %v1338 = vsub.s32 1, %v1337
        %v1339 = vrot.slane %v1330, %v1338
        %v1342 = vmul.f32 %v1305, %v1335
        %v1343 = vmul.f32 %v1307, %v1339
        %1345 = vset.pattern.permute.xlu0 0
        %1346 = vperm.xlu0 %1345, %v1342
        %v1347 = vpop.permute.xlu0 %1346
        %1350 = vset.pattern.permute.xlu0 0
        %1351 = vperm.xlu0 %1350, %v1343
        %v1352 = vpop.permute.xlu0 %1351
        %v1354 = vmul.f32 %v1217, %v1347
        %v1355 = vmul.f32 %v1218, %v1352
        %v1356 = vsel %vm996, %v1354, 0.0
        %v1357 = vrot.slane %v1356, 4
        %v1358 = vadd.f32 %v1356, %v1357
        %v1359 = vrot.slane %v1358, 2
        %v1360 = vadd.f32 %v1358, %v1359
        %v1361 = vrot.slane %v1360, 1
        %v1362 = vadd.f32 %v1360, %v1361
        %v1363 = vsel %vm996, %v1355, 0.0
        %v1364 = vrot.slane %v1363, 4
        %v1365 = vadd.f32 %v1363, %v1364
        %v1366 = vrot.slane %v1365, 2
        %v1367 = vadd.f32 %v1365, %v1366
        %v1368 = vrot.slane %v1367, 1
        %v1369 = vadd.f32 %v1367, %v1368
        %v1372 = vsel %vm1284, %v1369, %v1362
        %v1373 = vsel %vm996, %v1372, 0
        %1375 = vmatprep.subr.mxu0 0.0
        %1376 = vmatpush1.msra.mxu0 %v1105
        %1377 = vmatprep.subr.mxu0 0.0
        %1378 = vmatpush1.msra.mxu0 %v1106
        %1379 = vmatprep.subr.mxu0 0.0
        %1380 = vmatpush1.msra.mxu0 %v1107
        %1381 = vmatprep.subr.mxu0 0.0
        %1382 = vmatpush1.msra.mxu0 %v1108
        %1383 = vmatprep.subr.mxu0 0.0
        %1384 = vmatpush1.msra.mxu0 0.0
        %1385 = vmatprep.subr.mxu0 0.0
        %1386 = vmatpush1.msra.mxu0 0.0
        %1387 = vmatprep.subr.mxu0 0.0
        %1388 = vmatpush1.msra.mxu0 0.0
        %1389 = vmatprep.subr.mxu0 0.0
        %1390 = vmatpush1.msra.mxu0 0.0
        %1391 = vmatprep.subr.mxu0 0.0
        %1392 = vmatpush1.msra.mxu0 0.0
        %1393 = vmatprep.subr.mxu0 0.0
        %1394 = vmatpush1.msra.mxu0 0.0
        %1395 = vmatprep.subr.mxu0 0.0
        %1396 = vmatpush1.msra.mxu0 0.0
        %1397 = vmatprep.subr.mxu0 0.0
        %1398 = vmatpush1.msra.mxu0 0.0
        %1399 = vmatprep.subr.mxu0 0.0
        %1400 = vmatpush1.msra.mxu0 0.0
        %1401 = vmatprep.subr.mxu0 0.0
        %1402 = vmatpush1.msra.mxu0 0.0
        %1403 = vmatprep.subr.mxu0 0.0
        %1404 = vmatpush1.msra.mxu0 0.0
        %1405 = vmatprep.subr.mxu0 0.0
        %1406 = vmatpush1.msra.mxu0 0.0
        %1407 = vmatprep.subr.mxu0 0.0
        %1408 = vmatpush1.msra.mxu0 0.0
        %1409 = vmatprep.subr.mxu0 0.0
        %1410 = vmatpush1.msra.mxu0 0.0
        %1411 = vmatprep.subr.mxu0 0.0
        %1412 = vmatpush1.msra.mxu0 0.0
        %1413 = vmatprep.subr.mxu0 0.0
        %1414 = vmatpush1.msra.mxu0 0.0
        %1415 = vmatprep.subr.mxu0 0.0
        %1416 = vmatpush1.msra.mxu0 0.0
        %1417 = vmatprep.subr.mxu0 0.0
        %1418 = vmatpush1.msra.mxu0 0.0
        %1419 = vmatprep.subr.mxu0 0.0
        %1420 = vmatpush1.msra.mxu0 0.0
        %1421 = vmatprep.subr.mxu0 0.0
        %1422 = vmatpush1.msra.mxu0 0.0
        %1423 = vmatprep.subr.mxu0 0.0
        %1424 = vmatpush1.msra.mxu0 0.0
        %1425 = vmatprep.subr.mxu0 0.0
        %1426 = vmatpush1.msra.mxu0 0.0
        %1427 = vmatprep.subr.mxu0 0.0
        %1428 = vmatpush1.msra.mxu0 0.0
        %1429 = vmatprep.subr.mxu0 0.0
        %1430 = vmatpush1.msra.mxu0 0.0
        %1431 = vmatprep.subr.mxu0 0.0
        %1432 = vmatpush1.msra.mxu0 0.0
        %1433 = vmatprep.subr.mxu0 0.0
        %1434 = vmatpush1.msra.mxu0 0.0
        %1435 = vmatprep.subr.mxu0 0.0
        %1436 = vmatpush1.msra.mxu0 0.0
        %1437 = vmatprep.subr.mxu0 0.0
        %1438 = vmatpush1.msra.mxu0 0.0
        %1439 = vmatprep.mubr.f32.mxu0 0.0
        %1440 = vmatmul.mubr.f32.gmra.mrb[0].mxu0 %v1373
        %v1441 = vpop.f32.mrb[0].mxu0
        %v1442 = vadd.f32 0.0, %v1441
        %v1443 = vpop.f32.mrb[0].mxu0
        %1444 = vdwg.mxu0
        %v1447 = vunpack.c.l.s4 1966171168
        %v1448 = vunpack.c.0.s8 %v1447
        %v1449 = vlaneseq
        %v1450 = vshrl.u32 %v1449, 7
        %v1451 = vsub.s32 %v1448, %v1450
        %v1452 = vrot.slane %v1442, %v1451
        %v1453 = vcombine.high %v1452, %v1452
        %v1455 = vunpack.c.l.s4 1966171168
        %v1456 = vunpack.c.0.s8 %v1455
        %v1457 = vlaneseq
        %v1458 = vshrl.u32 %v1457, 7
        %v1459 = vsub.s32 %v1456, %v1458
        %v1460 = vrot.slane %v1452, %v1459
        %v1462 = vunpack.c.l.s4 1966171168
        %v1463 = vunpack.c.0.s8 %v1462
        %v1464 = vlaneseq
        %v1465 = vshrl.u32 %v1464, 7
        %v1466 = vsub.s32 %v1463, %v1465
        %v1467 = vrot.slane %v1453, %v1466
        %v1468 = vld [vmem:[#allocation3] sm:$0xff]
        %v1469 = vld [vmem:[#allocation3 + $0x8] sm:$0xff]
        %v1470 = vlaneseq
        %v1471 = vshrl.u32 %v1470, 7
        %v1472 = vsub.s32 0, %v1471
        %v1473 = vrot.slane %v1460, %v1472
        %v1474 = vlaneseq
        %v1475 = vshrl.u32 %v1474, 7
        %v1476 = vsub.s32 0, %v1475
        %v1477 = vrot.slane %v1467, %v1476
        %v1480 = vadd.f32 %v1473, %v1468
        %v1481 = vadd.f32 %v1477, %v1469
        %v1482 = vtanh.pop %v1480
        %v1483 = vtanh.pop %v1481
        %v1485 = vlaneseq
        %v1486 = vshrl.u32 %v1485, 7
        %v1487 = vsub.s32 0, %v1486
        %v1488 = vrot.slane %v1111, %v1487
        %v1490 = vmul.f32 %v1482, %v1488
        %v1491 = vmul.f32 %v1483, %v1488
        %v1492 = vsel %vm996, %v1490, 0.0
        %1493 = vadd.xlane.f32.xlu0 %v1492
        %v1494 = vpop.xlane.xlu0 %1493
        %v1495 = vsel %vm996, %v1491, 0.0
        %1496 = vadd.xlane.f32.xlu0 %v1495
        %v1497 = vpop.xlane.xlu0 %1496
        %v1498 = vtanh.pop %v1494
        %v1499 = vtanh.pop %v1497
        %v1500 = vmul.f32 %v1498, 10.0
        %v1501 = vmul.f32 %v1499, 10.0
        %v1502 = vadd.f32 %v1500, %v1254
        %v1503 = vadd.f32 %v1501, %v1261
        %1506 = vset.pattern.permute.xlu0 0
        %1507 = vperm.xlu0 %1506, %v1502
        %v1508 = vpop.permute.xlu0 %1507
        %1509 = vset.pattern.permute.xlu0 0
        %1510 = vperm.xlu0 %1509, %v1503
        %v1511 = vpop.permute.xlu0 %1510
        %v1512 = vlaneseq
        %v1513 = vshrl.u32 %v1512, 7
        %v1514 = vsub.s32 %v1275, %v1513
        %v1515 = vrot.slane %v1508, %v1514
        %v1516 = vlaneseq
        %v1517 = vshrl.u32 %v1516, 7
        %v1518 = vsub.s32 %v1275, %v1517
        %v1519 = vrot.slane %v1511, %v1518
        %v1520 = vsel %vm1284, %v1519, %v1515
        %v1522 = vsel %vm1287, %v1520, -inf
        %1523 = vmax.xlane.f32.xlu0 %v1522
        %v1524 = vpop.xlane.xlu0 %1523
        %v1526 = vlaneseq
        %v1527 = vshrl.u32 %v1526, 7
        %v1528 = vsub.s32 0, %v1527
        %v1529 = vrot.slane %v1524, %v1528
        %v1530 = vlaneseq
        %v1531 = vshrl.u32 %v1530, 7
        %v1532 = vsub.s32 1, %v1531
        %v1533 = vrot.slane %v1524, %v1532
        %v1536 = vsub.f32 %v1502, %v1529
        %v1537 = vsub.f32 %v1503, %v1533
        %v1538 = vmul.f32 %v1536, 1.442695
        %v1539 = vpow.pop %v1538
        %v1540 = vmul.f32 %v1537, 1.442695
        %v1541 = vpow.pop %v1540
        %1544 = vset.pattern.permute.xlu0 0
        %1545 = vperm.xlu0 %1544, %v1539
        %v1546 = vpop.permute.xlu0 %1545
        %1547 = vset.pattern.permute.xlu0 0
        %1548 = vperm.xlu0 %1547, %v1541
        %v1549 = vpop.permute.xlu0 %1548
        %v1550 = vlaneseq
        %v1551 = vshrl.u32 %v1550, 7
        %v1552 = vsub.s32 %v1275, %v1551
        %v1553 = vrot.slane %v1546, %v1552
        %v1554 = vlaneseq
        %v1555 = vshrl.u32 %v1554, 7
        %v1556 = vsub.s32 %v1275, %v1555
        %v1557 = vrot.slane %v1549, %v1556
        %v1558 = vsel %vm1284, %v1557, %v1553
        %v1560 = vsel %vm1287, %v1558, 0.0
        %1561 = vadd.xlane.f32.xlu0 %v1560
        %v1562 = vpop.xlane.xlu0 %1561
        %v1564 = vlaneseq
        %v1565 = vshrl.u32 %v1564, 7
        %v1566 = vsub.s32 0, %v1565
        %v1567 = vrot.slane %v1562, %v1566
        %v1568 = vlaneseq
        %v1569 = vshrl.u32 %v1568, 7
        %v1570 = vsub.s32 1, %v1569
        %v1571 = vrot.slane %v1562, %v1570
        %v1574 = vrcp.pop %v1567
        %v1575 = vmul.f32 %v1539, %v1574
        %v1576 = vrcp.pop %v1571
        %v1577 = vmul.f32 %v1541, %v1576
        %1580 = vset.pattern.permute.xlu0 0
        %1581 = vperm.xlu0 %1580, %v1575
        %v1582 = vpop.permute.xlu0 %1581
        %1583 = vset.pattern.permute.xlu0 0
        %1584 = vperm.xlu0 %1583, %v1577
        %v1585 = vpop.permute.xlu0 %1584
        %v1586 = vlaneseq
        %v1587 = vshrl.u32 %v1586, 7
        %v1588 = vsub.s32 %v1275, %v1587
        %v1589 = vrot.slane %v1582, %v1588
        %v1590 = vlaneseq
        %v1591 = vshrl.u32 %v1590, 7
        %v1592 = vsub.s32 %v1275, %v1591
        %v1593 = vrot.slane %v1585, %v1592
        %v1594 = vsel %vm1284, %v1593, %v1589
        %1596 = vst.msk [vmem:[%s667] sm:$0x3] %vm1287, %v1594
        %v1597 = vcvt.s32.f32 %v1275
        %v1598 = vld [vmem:[%s596] sm:$0x1]
        %v1599 = vunpack.c.l.bf16 %v1598
        %v1602 = vunpack.c.l.s4 1983009808
        %v1603 = vunpack.c.0.s8 %v1602
        %v1604 = vlaneseq
        %v1605 = vshrl.u32 %v1604, 7
        %v1606 = vsub.s32 %v1603, %v1605
        %v1607 = vrot.slane %v1599, %v1606
        %v1608 = vlaneseq
        %v1609 = vshrl.u32 %v1608, 7
        %v1610 = vsub.s32 0, %v1609
        %v1611 = vrot.slane %v1607, %v1610
        %1613 = vbcast.lane.b32.xlu0 %v1611, 256
        %v1614 = vpop.permute.xlu0 %1613
        %v1615 = vlaneseq
        %v1616 = vshrl.u32 %v1615, 7
        %v1617 = vsub.s32 1, %v1616
        %v1618 = vrot.slane %v1607, %v1617
        %1620 = vbcast.lane.b32.xlu0 %v1618, 256
        %v1621 = vpop.permute.xlu0 %1620
        %v1624 = vadd.f32 %v1502, %v1614
        %v1625 = vadd.f32 %v1503, %v1621
        %1628 = vset.pattern.permute.xlu0 0
        %1629 = vperm.xlu0 %1628, %v1624
        %v1630 = vpop.permute.xlu0 %1629
        %1631 = vset.pattern.permute.xlu0 0
        %1632 = vperm.xlu0 %1631, %v1625
        %v1633 = vpop.permute.xlu0 %1632
        %v1634 = vlaneseq
        %v1635 = vshrl.u32 %v1634, 7
        %v1636 = vsub.s32 %v1275, %v1635
        %v1637 = vrot.slane %v1630, %v1636
        %v1638 = vlaneseq
        %v1639 = vshrl.u32 %v1638, 7
        %v1640 = vsub.s32 %v1275, %v1639
        %v1641 = vrot.slane %v1633, %v1640
        %v1642 = vsel %vm1284, %v1641, %v1637
        %v1644 = vsel %vm1287, %v1642, -inf
        %1645 = vmax.xlane.f32.xlu0 %v1644
        %v1646 = vpop.xlane.xlu0 %1645
        %v1648 = vlaneseq
        %v1649 = vshrl.u32 %v1648, 7
        %v1650 = vsub.s32 0, %v1649
        %v1651 = vrot.slane %v1646, %v1650
        %v1652 = vlaneseq
        %v1653 = vshrl.u32 %v1652, 7
        %v1654 = vsub.s32 1, %v1653
        %v1655 = vrot.slane %v1646, %v1654
        %vm1658 = vcmp.ge.f32.partialorder %v1624, %v1651
        %vm1659 = vcmp.ge.f32.partialorder %v1625, %v1655
        %1662 = vbcast.lane.b32.xlu0 %v1597, 256
        %v1663 = vpop.permute.xlu0 %1662
        %v1665 = vsel %vm1658, %v1663, 8.0
        %v1666 = vsel %vm1659, %v1663, 8.0
        %1669 = vset.pattern.permute.xlu0 0
        %1670 = vperm.xlu0 %1669, %v1665
        %v1671 = vpop.permute.xlu0 %1670
        %1672 = vset.pattern.permute.xlu0 0
        %1673 = vperm.xlu0 %1672, %v1666
        %v1674 = vpop.permute.xlu0 %1673
        %v1675 = vlaneseq
        %v1676 = vshrl.u32 %v1675, 7
        %v1677 = vsub.s32 %v1275, %v1676
        %v1678 = vrot.slane %v1671, %v1677
        %v1679 = vlaneseq
        %v1680 = vshrl.u32 %v1679, 7
        %v1681 = vsub.s32 %v1275, %v1680
        %v1682 = vrot.slane %v1674, %v1681
        %v1683 = vsel %vm1284, %v1682, %v1678
        %v1685 = vsel %vm1287, %v1683, inf
        %1686 = vmin.xlane.f32.xlu0 %v1685
        %v1687 = vpop.xlane.xlu0 %1686
        %vm1688 = vcmp.eq.f32.partialorder %v1597, %v1687
        %v1689 = vsel %vm1688, 1, 0
        %v1690 = vcvt.s32.f32 %v1689
        %v1691 = vmul.f32 %v1690, -1e+30
        %v1692 = vmin.f32 %v1099, %v1691
        %1693 = vst.msk [vmem:[#allocation7] sm:$0x3] %vm1287, %v1692
        %v1694 = vld [vmem:[#allocation4] sm:$0xff]
        %v1695 = vld [vmem:[#allocation4 + $0x8] sm:$0xff]
        %v1696 = vlaneseq
        %v1697 = vshrl.u32 %v1696, 7
        %v1698 = vsub.s32 0, %v1697
        %v1699 = vrot.slane %v1690, %v1698
        %1701 = vbcast.lane.b32.xlu0 %v1699, 256
        %v1702 = vpop.permute.xlu0 %1701
        %v1703 = vlaneseq
        %v1704 = vshrl.u32 %v1703, 7
        %v1705 = vsub.s32 1, %v1704
        %v1706 = vrot.slane %v1690, %v1705
        %1708 = vbcast.lane.b32.xlu0 %v1706, 256
        %v1709 = vpop.permute.xlu0 %1708
        %v1710 = vmul.f32 %v1694, %v1702
        %v1711 = vmul.f32 %v1695, %v1709
        %vm1712 = vcmask 785408
        %v1713 = vsel %vm1712, %v1710, 0.0
        %v1714 = vrot.slane %v1713, 4
        %v1715 = vadd.f32 %v1713, %v1714
        %v1716 = vrot.slane %v1715, 2
        %v1717 = vadd.f32 %v1715, %v1716
        %v1718 = vrot.slane %v1717, 1
        %v1719 = vadd.f32 %v1717, %v1718
        %v1720 = vsel %vm1712, %v1711, 0.0
        %v1721 = vrot.slane %v1720, 4
        %v1722 = vadd.f32 %v1720, %v1721
        %v1723 = vrot.slane %v1722, 2
        %v1724 = vadd.f32 %v1722, %v1723
        %v1725 = vrot.slane %v1724, 1
        %v1726 = vadd.f32 %v1724, %v1725
        %v1729 = vsel %vm1284, %v1726, %v1719
        %vm1731 = vcmask 779264
        %1732 = vst.msk [vmem:[#allocation5] sm:$0x3] %vm1731, %v1729
        %vm1734 = vcmask 254976
        %1735 = vst.msk [vmem:[#allocation6] sm:$0x3] %vm1734, %v1121
        %v1736 = vstv %s43
        %vm1737 = vcmp.eq.s32.totalorder %v1275, %v1736
        %v1738 = vcvt.f32.s32.to.zero.pseudo %v1687
        %v1739 = vld [vmem:[#allocation20] sm:$0x3]
        %v1740 = vsel %vm1737, %v1738, %v1739
        %1741 = vst.msk [vmem:[#allocation20] sm:$0x3] %vm1287, %v1740
        %p1742 = scmp.eq.s32.totalorder %s43, 7
        // Predicated region
        $region105: #{tpu_custom_call.1} parent=75 // pred_check
          %p1743 = pneg %p1742
        $region106: #{tpu_custom_call.1} parent=75 // pred_check_branch
          %1745 = sbr.rel (%p1743) target = $region108
        $region107: #{tpu_custom_call.1} parent=75 // pred_region
          %1746 = vst.msk [vmem:[#allocation22] sm:$0x3] %vm1734, %v1121
        $region108: #{tpu_custom_call.1} parent=75 // pred_fallthru
          _
        %s1747 = sand.u32 %s381, 1
        %s1748 = scalar_lea.sflag [#allocation10], %s1747
        %s1749 = sand.u32 %s381, 1
        %s1750 = smul.addr %s1749, 2
        %s1751 = scalar_lea.vmem [#allocation19], %s1750
        // Predicated region
        $region109: #{tpu_custom_call.1} parent=75 // pred_check
          %p1752 = pneg %p391
        $region110: #{tpu_custom_call.1} parent=75 // pred_check_branch
          %1754 = sbr.rel (%p1752) target = $region112
        $region111: #{tpu_custom_call.1} parent=75 // pred_region
          %s1756 = ssub.s32 32, 32
          %1757 = vsyncadd %s1748, %s1756
          %s1758 = sadd.s32 %s42, %s43
          %s1759 = smul.addr %s1758, 32
          %s1760 = scalar_lea.hbm %s14, %s1759
          %s1762 = sshll.u32 %s1751, 4
          %s1763 = int_to_ptr.vmem [resolvable:$true] %s1762
          %1765 = dma.vmem_to_hbm [thread:$0]  %s1763, 32, %s1760, %s1748
        $region112: #{tpu_custom_call.1} parent=75 // pred_fallthru
          _
        // Predicated region
        $region113: #{tpu_custom_call.1} parent=75 // pred_check
          %p1766 = pneg %p417
        $region114: #{tpu_custom_call.1} parent=75 // pred_check_branch
          %1768 = sbr.rel (%p1766) target = $region116
        $region115: #{tpu_custom_call.1} parent=75 // pred_region
          %s1770 = ssub.s32 32, 32
          %1771 = vsyncadd [#allocation21], %s1770
          %s1772 = smul.addr %s42, 32
          %s1773 = scalar_lea.hbm %s15, %s1772
          %s1775 = sshll.u32 [#allocation20], 4
          %s1776 = int_to_ptr.vmem [resolvable:$true] %s1775
          %1778 = dma.vmem_to_hbm [thread:$0]  %s1776, 32, %s1773, [#allocation21]
        $region116: #{tpu_custom_call.1} parent=75 // pred_fallthru
          _
        // Predicated region
        $region117: #{tpu_custom_call.1} parent=75 // pred_check
          %p1779 = pneg %p443
        $region118: #{tpu_custom_call.1} parent=75 // pred_check_branch
          %1781 = sbr.rel (%p1779) target = $region120
        $region119: #{tpu_custom_call.1} parent=75 // pred_region
          %s1783 = ssub.s32 32, 32
          %1784 = vsyncadd [#allocation21], %s1783
          %s1785 = smul.addr %s42, 32
          %s1786 = scalar_lea.hbm %s16, %s1785
          %s1788 = sshll.u32 [#allocation22], 4
          %s1789 = int_to_ptr.vmem [resolvable:$true] %s1788
          %1791 = dma.vmem_to_hbm [thread:$0]  %s1789, 32, %s1786, [#allocation21]
        $region120: #{tpu_custom_call.1} parent=75 // pred_fallthru
          _
        // Predicated region
        $region121: #{tpu_custom_call.1} parent=75 // pred_check
          %p1792 = pneg %p417
        $region122: #{tpu_custom_call.1} parent=75 // pred_check_branch
          %1794 = sbr.rel (%p1792) target = $region124
        $region123: #{tpu_custom_call.1} parent=75 // pred_region
          %1795 = dma.done [#allocation21], 32
        $region124: #{tpu_custom_call.1} parent=75 // pred_fallthru
          _
        // Predicated region
        $region125: #{tpu_custom_call.1} parent=75 // pred_check
          %p1796 = pneg %p443
        $region126: #{tpu_custom_call.1} parent=75 // pred_check_branch
          %1798 = sbr.rel (%p1796) target = $region128
        $region127: #{tpu_custom_call.1} parent=75 // pred_region
          %1799 = dma.done [#allocation21], 32
        $region128: #{tpu_custom_call.1} parent=75 // pred_fallthru
          _
      $region76: #{tpu_custom_call.1} parent=5 // pred_fallthru
        _
      %p1800 = scmp.le.s32.totalorder 2, %s33
      // Predicated region
      $region129: #{tpu_custom_call.1} parent=5 // pred_check
        %p1801 = pneg %p1800
      $region130: #{tpu_custom_call.1} parent=5 // pred_check_branch
        %1803 = sbr.rel (%p1801) target = $region132
      $region131: #{tpu_custom_call.1} parent=5 // pred_region
        %s1804 = ssub.s32 %s33, 2
        // Predicated region
        $region133: #{tpu_custom_call.1} parent=131 // pred_check
          %p1805 = pneg %p397
        $region134: #{tpu_custom_call.1} parent=131 // pred_check_branch
          %1807 = sbr.rel (%p1805) target = $region136
        $region135: #{tpu_custom_call.1} parent=131 // pred_region
          %s1808 = sand.u32 %s382, 1
          %s1809 = scalar_lea.sflag [#allocation10], %s1808
          %s1810 = sand.u32 %s382, 1
          %s1811 = smul.addr %s1810, 2
          %s1812 = scalar_lea.vmem [#allocation19], %s1811
          %1813 = dma.done %s1809, 32
        $region136: #{tpu_custom_call.1} parent=131 // pred_fallthru
          _
      $region132: #{tpu_custom_call.1} parent=5 // pred_fallthru
        _
    $region6: #{tpu_custom_call.1} parent=1 // loop_footer
      %s37 = sadd.s32 1, %s33
    $region7: #{tpu_custom_call.1} parent=1 // loop_footer_branch
      %32 = sbr.rel target = $region3
    $region8: #{tpu_custom_call.1} parent=1 // loop_exit
      _
    %1814 = vsyncpa [#allocation9], 1
    %s1815 = scalar_lea.sflag [#allocation9], 1
    %1816 = vsyncpa %s1815, 1
    %1817 = vsyncpa [#allocation12], 1
    %1818 = vsyncpa [#allocation15], 1
    %1819 = vsyncpa [#allocation18], 1
    %1820 = vsyncpa [#allocation10], 1
    %s1821 = scalar_lea.sflag [#allocation10], 1
    %1822 = vsyncpa %s1821, 1
    %1823 = vsyncpa [#allocation21], 1

</llo_original>
